<compile_context>
chip_gen: v7x
topology: tpu7x:2x2x1
jax: 0.10.0
libtpu: 0.0.40
codegen_flags: <defaults>
</compile_context>

<pallas_src>
import jax
import jax.numpy as jnp
from jax.experimental import pallas as pl
from jax.experimental.pallas import tpu as pltpu

# ---------------- model hyper-parameters (small, deterministic) ----------------
INPUT_DIM = 2
OUTPUT_DIM = 1
INPUT_CHUNK_LENGTH = 8
OUTPUT_CHUNK_LENGTH = 4
NUM_STACKS = 2
NUM_BLOCKS = 2
NUM_LAYERS = 2
LAYER_WIDTH = 32
EXPANSION_COEFF_DIM = 4

ICLM = INPUT_CHUNK_LENGTH * INPUT_DIM        # input_chunk_length_multi
TL = OUTPUT_CHUNK_LENGTH * INPUT_DIM         # target_length
NBLK = NUM_STACKS * NUM_BLOCKS               # total number of blocks
ECD = EXPANSION_COEFF_DIM
BW = max(LAYER_WIDTH, 2 * ECD, ICLM + TL)    # packed bias row width (=32 here)


# -------------------------------- Pallas kernel --------------------------------
def _nbeats_kernel(x_ref, w0t_ref, wht_ref, wforkt_ref, wgent_ref, bias_ref, y_ref):
    # Residual / forecast carry in registers, all blocks fully unrolled.
    resid = x_ref[...]                               # (BT, ICLM) f32
    y = jnp.zeros(y_ref.shape, jnp.float32)          # (BT, TL)

    for blk in range(NBLK):
        b = bias_ref[blk]                            # (NUM_LAYERS + 2, BW)

        # fully-connected stack with ReLU (weights pre-transposed: plain a @ w)
        h = jnp.maximum(
            jnp.dot(resid, w0t_ref[blk], preferred_element_type=jnp.float32)
            + b[0:1, :LAYER_WIDTH], 0.0)
        for l in range(NUM_LAYERS - 1):
            h = jnp.maximum(
                jnp.dot(h, wht_ref[blk * (NUM_LAYERS - 1) + l],
                        preferred_element_type=jnp.float32)
                + b[1 + l:2 + l, :LAYER_WIDTH], 0.0)

        # fused forking layers: theta = [theta_backcast | theta_forecast]
        theta = (jnp.dot(h, wforkt_ref[blk], preferred_element_type=jnp.float32)
                 + b[NUM_LAYERS:NUM_LAYERS + 1, :2 * ECD])

        # fused block-diagonal generic generators: out = [x_hat | y_hat]
        out = (jnp.dot(theta, wgent_ref[blk], preferred_element_type=jnp.float32)
               + b[NUM_LAYERS + 1:NUM_LAYERS + 2, :ICLM + TL])

        resid = resid - out[:, :ICLM]
        y = y + out[:, ICLM:ICLM + TL]

    y_ref[...] = y


# --------------------------- parameter packing (trace time) ---------------------
def pack_params(params):
    f32 = jnp.float32
    # pre-transposed FC weights (contraction on leading dim, output on lanes)
    w0t = jnp.transpose(params["w0"], (0, 2, 1)).astype(f32)                 # (NBLK, ICLM, LW)
    wht = jnp.transpose(params["wh"], (0, 1, 3, 2)).astype(f32)
    wht = wht.reshape(NBLK * (NUM_LAYERS - 1), LAYER_WIDTH, LAYER_WIDTH)     # (NBLK*(NL-1), LW, LW)

    # fused forking layer: (NBLK, LW, 2*ECD)
    wforkt = jnp.concatenate(
        [jnp.transpose(params["wbt"], (0, 2, 1)),
         jnp.transpose(params["wft"], (0, 2, 1))], axis=2).astype(f32)

    # fused block-diagonal generator: (NBLK, 2*ECD, ICLM+TL)
    wbgt = jnp.transpose(params["wbg"], (0, 2, 1)).astype(f32)               # (NBLK, ECD, ICLM)
    wfgt = jnp.transpose(params["wfg"], (0, 2, 1)).astype(f32)               # (NBLK, ECD, TL)
    top = jnp.concatenate([wbgt, jnp.zeros((NBLK, ECD, TL), f32)], axis=2)
    bot = jnp.concatenate([jnp.zeros((NBLK, ECD, ICLM), f32), wfgt], axis=2)
    wgent = jnp.concatenate([top, bot], axis=1)

    # all biases packed row-wise into (NBLK, NUM_LAYERS+2, BW)
    def pad_w(a):
        return jnp.pad(a, ((0, 0), (0, 0), (0, BW - a.shape[2])))
    b_fc = jnp.concatenate([params["b0"], params["bh"][:, :, 0, :]], axis=1)  # (NBLK, NL, LW)
    b_fork = jnp.concatenate([params["bbt"], params["bft"]], axis=2)          # (NBLK, 1, 2*ECD)
    b_gen = jnp.concatenate([params["bbg"], params["bfg"]], axis=2)           # (NBLK, 1, ICLM+TL)
    bias = jnp.concatenate([pad_w(b_fc), pad_w(b_fork), pad_w(b_gen)],
                           axis=1).astype(f32)
    return w0t, wht, wforkt, wgent, bias


# ----------------------------------- wrapper ------------------------------------
def nbeats_forward(x, params):
    B = x.shape[0]
    x2 = x.reshape(B, ICLM).astype(jnp.float32)
    w0t, wht, wforkt, wgent, bias = pack_params(params)

    # pad batch to a sublane multiple (dense vregs, unmasked sublane rows)
    BP = ((B + 7) // 8) * 8
    BT = min(BP, 512)                       # batch tile (multiple of 8)
    BP = ((BP + BT - 1) // BT) * BT
    if BP != B:
        x2 = jnp.pad(x2, ((0, BP - B), (0, 0)))

    y = pl.pallas_call(
        _nbeats_kernel,
        out_shape=jax.ShapeDtypeStruct((BP, TL), jnp.float32),
        grid_spec=pltpu.PrefetchScalarGridSpec(
            num_scalar_prefetch=0,
            grid=(BP // BT,),
            in_specs=[
                pl.BlockSpec((BT, ICLM), lambda i: (i, 0)),        # x (batch-tiled)
                pl.BlockSpec(w0t.shape, lambda i: (0, 0, 0)),      # weights resident
                pl.BlockSpec(wht.shape, lambda i: (0, 0, 0)),
                pl.BlockSpec(wforkt.shape, lambda i: (0, 0, 0)),
                pl.BlockSpec(wgent.shape, lambda i: (0, 0, 0)),
                pl.BlockSpec(bias.shape, lambda i: (0, 0, 0)),
            ],
            out_specs=pl.BlockSpec((BT, TL), lambda i: (i, 0)),
        ),
        compiler_params=pltpu.CompilerParams(
            dimension_semantics=("parallel",)),                    # megacore on v7x
    )(x2, w0t, wht, wforkt, wgent, bias)

    y = y[:B].reshape(B, OUTPUT_CHUNK_LENGTH, INPUT_DIM)[:, :, :OUTPUT_DIM]
    return y


# ---------------------------- pure-JAX reference --------------------------------
def nbeats_ref(x, params):
    B = x.shape[0]
    resid = x.reshape(B, ICLM).astype(jnp.float32)
    acc = jnp.zeros((B, TL), jnp.float32)
    for i in range(NBLK):
        h = resid
        h = jax.nn.relu(h @ params["w0"][i].T + params["b0"][i, 0])
        for l in range(NUM_LAYERS - 1):
            h = jax.nn.relu(h @ params["wh"][i, l].T + params["bh"][i, l, 0])
        tb = h @ params["wbt"][i].T + params["bbt"][i, 0]
        tf = h @ params["wft"][i].T + params["bft"][i, 0]
        x_hat = tb @ params["wbg"][i].T + params["bbg"][i, 0]
        y_hat = tf @ params["wfg"][i].T + params["bfg"][i, 0]
        resid = resid - x_hat
        acc = acc + y_hat
    return acc.reshape(B, OUTPUT_CHUNK_LENGTH, INPUT_DIM)[:, :, :OUTPUT_DIM]


# ------------------------ deterministic parameter init ---------------------------
def init_params(key):
    def linear(k, out_dim, in_dim):
        kw, kb = jax.random.split(k)
        bound = 1.0 / jnp.sqrt(float(in_dim))
        w = jax.random.uniform(kw, (out_dim, in_dim), jnp.float32, -bound, bound)
        b = jax.random.uniform(kb, (out_dim,), jnp.float32, -bound, bound)
        return w, b

    keys = jax.random.split(key, NBLK)
    W0, B0, WH, BH = [], [], [], []
    WBT, BBT, WFT, BFT = [], [], [], []
    WBG, BBG, WFG, BFG = [], [], [], []
    for kb in keys:
        ks = jax.random.split(kb, NUM_LAYERS + 5)
        w, b = linear(ks[0], LAYER_WIDTH, ICLM); W0.append(w); B0.append(b)
        whs, bhs = [], []
        for l in range(NUM_LAYERS - 1):
            w, b = linear(ks[1 + l], LAYER_WIDTH, LAYER_WIDTH)
            whs.append(w); bhs.append(b)
        WH.append(jnp.stack(whs)); BH.append(jnp.stack(bhs))
        base = NUM_LAYERS
        w, b = linear(ks[base + 0], EXPANSION_COEFF_DIM, LAYER_WIDTH); WBT.append(w); BBT.append(b)
        w, b = linear(ks[base + 1], EXPANSION_COEFF_DIM, LAYER_WIDTH); WFT.append(w); BFT.append(b)
        w, b = linear(ks[base + 2], ICLM, EXPANSION_COEFF_DIM); WBG.append(w); BBG.append(b)
        w, b = linear(ks[base + 3], TL, EXPANSION_COEFF_DIM); WFG.append(w); BFG.append(b)

    return dict(
        w0=jnp.stack(W0),                       # (NBLK, LW, ICLM)
        b0=jnp.stack(B0)[:, None, :],           # (NBLK, 1, LW)
        wh=jnp.stack(WH),                       # (NBLK, NL-1, LW, LW)
        bh=jnp.stack(BH)[:, :, None, :],        # (NBLK, NL-1, 1, LW)
        wbt=jnp.stack(WBT),                     # (NBLK, ECD, LW)
        bbt=jnp.stack(BBT)[:, None, :],         # (NBLK, 1, ECD)
        wft=jnp.stack(WFT),
        bft=jnp.stack(BFT)[:, None, :],
        wbg=jnp.stack(WBG),                     # (NBLK, ICLM, ECD)
        bbg=jnp.stack(BBG)[:, None, :],         # (NBLK, 1, ICLM)
        wfg=jnp.stack(WFG),                     # (NBLK, TL, ECD)
        bfg=jnp.stack(BFG)[:, None, :],         # (NBLK, 1, TL)
    )


# TODO(synk): the interpretable (TREND/SEASONALITY) variant uses fixed polynomial /
# Fourier generator matrices instead of Linear generators; only the GENERIC path is
# implemented here.

if __name__ == "__main__":
    key = jax.random.PRNGKey(0)
    kx, kp = jax.random.split(key)
    x = jax.random.normal(kx, (2, INPUT_CHUNK_LENGTH, INPUT_DIM), jnp.float32)
    params = init_params(kp)

    y = nbeats_forward(x, params)
    y = jax.block_until_ready(y)

    y_ref = nbeats_ref(x, params)
    assert y.shape == (2, OUTPUT_CHUNK_LENGTH, OUTPUT_DIM), y.shape
    assert jnp.allclose(y, y_ref, atol=1e-4, rtol=1e-4), (y, y_ref)
    print("KERNEL_OK")
</pallas_src>

<mosaic_0001>
module attributes {stable_mosaic.version = 11 : i64} {
  func.func @_nbeats_kernel(%arg0: i32, %arg1: memref<8x16xf32, #tpu.memory_space<vmem>>, %arg2: memref<4x16x32xf32, #tpu.memory_space<vmem>>, %arg3: memref<4x32x32xf32, #tpu.memory_space<vmem>>, %arg4: memref<4x32x8xf32, #tpu.memory_space<vmem>>, %arg5: memref<4x8x24xf32, #tpu.memory_space<vmem>>, %arg6: memref<4x4x32xf32, #tpu.memory_space<vmem>>, %arg7: memref<8x8xf32, #tpu.memory_space<vmem>>) attributes {dimension_semantics = [#tpu.dimension_semantics<parallel>], iteration_bounds = array<i64: 1>, scalar_prefetch = 0 : i64, scratch_operands = 0 : i64, tpu.core_type = #tpu.core_type<tc>, window_params = [{transform_indices = @transform_0, window_bounds = array<i64: 8, 16>}, {pipeline_mode = #tpu.pipeline_mode<synchronous>, transform_indices = @transform_1, window_bounds = array<i64: 4, 16, 32>}, {pipeline_mode = #tpu.pipeline_mode<synchronous>, transform_indices = @transform_2, window_bounds = array<i64: 4, 32, 32>}, {pipeline_mode = #tpu.pipeline_mode<synchronous>, transform_indices = @transform_3, window_bounds = array<i64: 4, 32, 8>}, {pipeline_mode = #tpu.pipeline_mode<synchronous>, transform_indices = @transform_4, window_bounds = array<i64: 4, 8, 24>}, {pipeline_mode = #tpu.pipeline_mode<synchronous>, transform_indices = @transform_5, window_bounds = array<i64: 4, 4, 32>}, {transform_indices = @transform_6, window_bounds = array<i64: 8, 8>}]} {
    %c0 = arith.constant 0 : index
    %c0_0 = arith.constant 0 : index
    %0 = vector.load %arg1[%c0, %c0_0] : memref<8x16xf32, #tpu.memory_space<vmem>>, vector<8x16xf32>
    %cst = arith.constant 0.000000e+00 : f32
    %1 = vector.broadcast %cst : f32 to vector<8x8xf32>
    %c0_1 = arith.constant 0 : index
    %c0_2 = arith.constant 0 : index
    %c0_3 = arith.constant 0 : index
    %2 = vector.load %arg6[%c0_1, %c0_2, %c0_3] : memref<4x4x32xf32, #tpu.memory_space<vmem>>, vector<1x4x32xf32>
    %3 = vector.shape_cast %2 : vector<1x4x32xf32> to vector<4x32xf32>
    %c0_4 = arith.constant 0 : index
    %c0_5 = arith.constant 0 : index
    %c0_6 = arith.constant 0 : index
    %4 = vector.load %arg2[%c0_4, %c0_5, %c0_6] : memref<4x16x32xf32, #tpu.memory_space<vmem>>, vector<1x16x32xf32>
    %5 = vector.shape_cast %4 : vector<1x16x32xf32> to vector<16x32xf32>
    %cst_7 = arith.constant dense<0.000000e+00> : vector<8x32xf32>
    %6 = tpu.matmul %0, %5, %cst_7 {dimension_numbers = #tpu.dot_dimension_numbers<[1], [0], [0], [1], [0, 0, 1, 1], [], []>} : vector<8x16xf32>, vector<16x32xf32>, vector<8x32xf32> -> vector<8x32xf32>
    %7 = vector.extract_strided_slice %3 {offsets = [0, 0], sizes = [1, 32], strides = [1, 1]} : vector<4x32xf32> to vector<1x32xf32>
    %8 = vector.broadcast %7 : vector<1x32xf32> to vector<8x32xf32>
    %9 = arith.addf %6, %8 : vector<8x32xf32>
    %cst_8 = arith.constant 0.000000e+00 : f32
    %10 = vector.broadcast %cst_8 : f32 to vector<8x32xf32>
    %11 = arith.maximumf %9, %10 : vector<8x32xf32>
    %c0_9 = arith.constant 0 : index
    %c0_10 = arith.constant 0 : index
    %c0_11 = arith.constant 0 : index
    %12 = vector.load %arg3[%c0_9, %c0_10, %c0_11] : memref<4x32x32xf32, #tpu.memory_space<vmem>>, vector<1x32x32xf32>
    %13 = vector.shape_cast %12 : vector<1x32x32xf32> to vector<32x32xf32>
    %cst_12 = arith.constant dense<0.000000e+00> : vector<8x32xf32>
    %14 = tpu.matmul %11, %13, %cst_12 {dimension_numbers = #tpu.dot_dimension_numbers<[1], [0], [0], [1], [0, 0, 1, 1], [], []>} : vector<8x32xf32>, vector<32x32xf32>, vector<8x32xf32> -> vector<8x32xf32>
    %15 = vector.extract_strided_slice %3 {offsets = [1, 0], sizes = [1, 32], strides = [1, 1]} : vector<4x32xf32> to vector<1x32xf32>
    %16 = vector.broadcast %15 : vector<1x32xf32> to vector<8x32xf32>
    %17 = arith.addf %14, %16 : vector<8x32xf32>
    %cst_13 = arith.constant 0.000000e+00 : f32
    %18 = vector.broadcast %cst_13 : f32 to vector<8x32xf32>
    %19 = arith.maximumf %17, %18 : vector<8x32xf32>
    %c0_14 = arith.constant 0 : index
    %c0_15 = arith.constant 0 : index
    %c0_16 = arith.constant 0 : index
    %20 = vector.load %arg4[%c0_14, %c0_15, %c0_16] : memref<4x32x8xf32, #tpu.memory_space<vmem>>, vector<1x32x8xf32>
    %21 = vector.shape_cast %20 : vector<1x32x8xf32> to vector<32x8xf32>
    %cst_17 = arith.constant dense<0.000000e+00> : vector<8x8xf32>
    %22 = tpu.matmul %19, %21, %cst_17 {dimension_numbers = #tpu.dot_dimension_numbers<[1], [0], [0], [1], [0, 0, 1, 1], [], []>} : vector<8x32xf32>, vector<32x8xf32>, vector<8x8xf32> -> vector<8x8xf32>
    %23 = vector.extract_strided_slice %3 {offsets = [2, 0], sizes = [1, 8], strides = [1, 1]} : vector<4x32xf32> to vector<1x8xf32>
    %24 = vector.broadcast %23 : vector<1x8xf32> to vector<8x8xf32>
    %25 = arith.addf %22, %24 : vector<8x8xf32>
    %c0_18 = arith.constant 0 : index
    %c0_19 = arith.constant 0 : index
    %c0_20 = arith.constant 0 : index
    %26 = vector.load %arg5[%c0_18, %c0_19, %c0_20] : memref<4x8x24xf32, #tpu.memory_space<vmem>>, vector<1x8x24xf32>
    %27 = vector.shape_cast %26 : vector<1x8x24xf32> to vector<8x24xf32>
    %cst_21 = arith.constant dense<0.000000e+00> : vector<8x24xf32>
    %28 = tpu.matmul %25, %27, %cst_21 {dimension_numbers = #tpu.dot_dimension_numbers<[1], [0], [0], [1], [0, 0, 1, 1], [], []>} : vector<8x8xf32>, vector<8x24xf32>, vector<8x24xf32> -> vector<8x24xf32>
    %29 = vector.extract_strided_slice %3 {offsets = [3, 0], sizes = [1, 24], strides = [1, 1]} : vector<4x32xf32> to vector<1x24xf32>
    %30 = vector.broadcast %29 : vector<1x24xf32> to vector<8x24xf32>
    %31 = arith.addf %28, %30 : vector<8x24xf32>
    %32 = vector.extract_strided_slice %31 {offsets = [0, 0], sizes = [8, 16], strides = [1, 1]} : vector<8x24xf32> to vector<8x16xf32>
    %33 = arith.subf %0, %32 : vector<8x16xf32>
    %34 = vector.extract_strided_slice %31 {offsets = [0, 16], sizes = [8, 8], strides = [1, 1]} : vector<8x24xf32> to vector<8x8xf32>
    %35 = arith.addf %1, %34 : vector<8x8xf32>
    %c1 = arith.constant 1 : index
    %c0_22 = arith.constant 0 : index
    %c0_23 = arith.constant 0 : index
    %36 = vector.load %arg6[%c1, %c0_22, %c0_23] : memref<4x4x32xf32, #tpu.memory_space<vmem>>, vector<1x4x32xf32>
    %37 = vector.shape_cast %36 : vector<1x4x32xf32> to vector<4x32xf32>
    %c1_24 = arith.constant 1 : index
    %c0_25 = arith.constant 0 : index
    %c0_26 = arith.constant 0 : index
    %38 = vector.load %arg2[%c1_24, %c0_25, %c0_26] : memref<4x16x32xf32, #tpu.memory_space<vmem>>, vector<1x16x32xf32>
    %39 = vector.shape_cast %38 : vector<1x16x32xf32> to vector<16x32xf32>
    %cst_27 = arith.constant dense<0.000000e+00> : vector<8x32xf32>
    %40 = tpu.matmul %33, %39, %cst_27 {dimension_numbers = #tpu.dot_dimension_numbers<[1], [0], [0], [1], [0, 0, 1, 1], [], []>} : vector<8x16xf32>, vector<16x32xf32>, vector<8x32xf32> -> vector<8x32xf32>
    %41 = vector.extract_strided_slice %37 {offsets = [0, 0], sizes = [1, 32], strides = [1, 1]} : vector<4x32xf32> to vector<1x32xf32>
    %42 = vector.broadcast %41 : vector<1x32xf32> to vector<8x32xf32>
    %43 = arith.addf %40, %42 : vector<8x32xf32>
    %cst_28 = arith.constant 0.000000e+00 : f32
    %44 = vector.broadcast %cst_28 : f32 to vector<8x32xf32>
    %45 = arith.maximumf %43, %44 : vector<8x32xf32>
    %c1_29 = arith.constant 1 : index
    %c0_30 = arith.constant 0 : index
    %c0_31 = arith.constant 0 : index
    %46 = vector.load %arg3[%c1_29, %c0_30, %c0_31] : memref<4x32x32xf32, #tpu.memory_space<vmem>>, vector<1x32x32xf32>
    %47 = vector.shape_cast %46 : vector<1x32x32xf32> to vector<32x32xf32>
    %cst_32 = arith.constant dense<0.000000e+00> : vector<8x32xf32>
    %48 = tpu.matmul %45, %47, %cst_32 {dimension_numbers = #tpu.dot_dimension_numbers<[1], [0], [0], [1], [0, 0, 1, 1], [], []>} : vector<8x32xf32>, vector<32x32xf32>, vector<8x32xf32> -> vector<8x32xf32>
    %49 = vector.extract_strided_slice %37 {offsets = [1, 0], sizes = [1, 32], strides = [1, 1]} : vector<4x32xf32> to vector<1x32xf32>
    %50 = vector.broadcast %49 : vector<1x32xf32> to vector<8x32xf32>
    %51 = arith.addf %48, %50 : vector<8x32xf32>
    %cst_33 = arith.constant 0.000000e+00 : f32
    %52 = vector.broadcast %cst_33 : f32 to vector<8x32xf32>
    %53 = arith.maximumf %51, %52 : vector<8x32xf32>
    %c1_34 = arith.constant 1 : index
    %c0_35 = arith.constant 0 : index
    %c0_36 = arith.constant 0 : index
    %54 = vector.load %arg4[%c1_34, %c0_35, %c0_36] : memref<4x32x8xf32, #tpu.memory_space<vmem>>, vector<1x32x8xf32>
    %55 = vector.shape_cast %54 : vector<1x32x8xf32> to vector<32x8xf32>
    %cst_37 = arith.constant dense<0.000000e+00> : vector<8x8xf32>
    %56 = tpu.matmul %53, %55, %cst_37 {dimension_numbers = #tpu.dot_dimension_numbers<[1], [0], [0], [1], [0, 0, 1, 1], [], []>} : vector<8x32xf32>, vector<32x8xf32>, vector<8x8xf32> -> vector<8x8xf32>
    %57 = vector.extract_strided_slice %37 {offsets = [2, 0], sizes = [1, 8], strides = [1, 1]} : vector<4x32xf32> to vector<1x8xf32>
    %58 = vector.broadcast %57 : vector<1x8xf32> to vector<8x8xf32>
    %59 = arith.addf %56, %58 : vector<8x8xf32>
    %c1_38 = arith.constant 1 : index
    %c0_39 = arith.constant 0 : index
    %c0_40 = arith.constant 0 : index
    %60 = vector.load %arg5[%c1_38, %c0_39, %c0_40] : memref<4x8x24xf32, #tpu.memory_space<vmem>>, vector<1x8x24xf32>
    %61 = vector.shape_cast %60 : vector<1x8x24xf32> to vector<8x24xf32>
    %cst_41 = arith.constant dense<0.000000e+00> : vector<8x24xf32>
    %62 = tpu.matmul %59, %61, %cst_41 {dimension_numbers = #tpu.dot_dimension_numbers<[1], [0], [0], [1], [0, 0, 1, 1], [], []>} : vector<8x8xf32>, vector<8x24xf32>, vector<8x24xf32> -> vector<8x24xf32>
    %63 = vector.extract_strided_slice %37 {offsets = [3, 0], sizes = [1, 24], strides = [1, 1]} : vector<4x32xf32> to vector<1x24xf32>
    %64 = vector.broadcast %63 : vector<1x24xf32> to vector<8x24xf32>
    %65 = arith.addf %62, %64 : vector<8x24xf32>
    %66 = vector.extract_strided_slice %65 {offsets = [0, 0], sizes = [8, 16], strides = [1, 1]} : vector<8x24xf32> to vector<8x16xf32>
    %67 = arith.subf %33, %66 : vector<8x16xf32>
    %68 = vector.extract_strided_slice %65 {offsets = [0, 16], sizes = [8, 8], strides = [1, 1]} : vector<8x24xf32> to vector<8x8xf32>
    %69 = arith.addf %35, %68 : vector<8x8xf32>
    %c2 = arith.constant 2 : index
    %c0_42 = arith.constant 0 : index
    %c0_43 = arith.constant 0 : index
    %70 = vector.load %arg6[%c2, %c0_42, %c0_43] : memref<4x4x32xf32, #tpu.memory_space<vmem>>, vector<1x4x32xf32>
    %71 = vector.shape_cast %70 : vector<1x4x32xf32> to vector<4x32xf32>
    %c2_44 = arith.constant 2 : index
    %c0_45 = arith.constant 0 : index
    %c0_46 = arith.constant 0 : index
    %72 = vector.load %arg2[%c2_44, %c0_45, %c0_46] : memref<4x16x32xf32, #tpu.memory_space<vmem>>, vector<1x16x32xf32>
    %73 = vector.shape_cast %72 : vector<1x16x32xf32> to vector<16x32xf32>
    %cst_47 = arith.constant dense<0.000000e+00> : vector<8x32xf32>
    %74 = tpu.matmul %67, %73, %cst_47 {dimension_numbers = #tpu.dot_dimension_numbers<[1], [0], [0], [1], [0, 0, 1, 1], [], []>} : vector<8x16xf32>, vector<16x32xf32>, vector<8x32xf32> -> vector<8x32xf32>
    %75 = vector.extract_strided_slice %71 {offsets = [0, 0], sizes = [1, 32], strides = [1, 1]} : vector<4x32xf32> to vector<1x32xf32>
    %76 = vector.broadcast %75 : vector<1x32xf32> to vector<8x32xf32>
    %77 = arith.addf %74, %76 : vector<8x32xf32>
    %cst_48 = arith.constant 0.000000e+00 : f32
    %78 = vector.broadcast %cst_48 : f32 to vector<8x32xf32>
    %79 = arith.maximumf %77, %78 : vector<8x32xf32>
    %c2_49 = arith.constant 2 : index
    %c0_50 = arith.constant 0 : index
    %c0_51 = arith.constant 0 : index
    %80 = vector.load %arg3[%c2_49, %c0_50, %c0_51] : memref<4x32x32xf32, #tpu.memory_space<vmem>>, vector<1x32x32xf32>
    %81 = vector.shape_cast %80 : vector<1x32x32xf32> to vector<32x32xf32>
    %cst_52 = arith.constant dense<0.000000e+00> : vector<8x32xf32>
    %82 = tpu.matmul %79, %81, %cst_52 {dimension_numbers = #tpu.dot_dimension_numbers<[1], [0], [0], [1], [0, 0, 1, 1], [], []>} : vector<8x32xf32>, vector<32x32xf32>, vector<8x32xf32> -> vector<8x32xf32>
    %83 = vector.extract_strided_slice %71 {offsets = [1, 0], sizes = [1, 32], strides = [1, 1]} : vector<4x32xf32> to vector<1x32xf32>
    %84 = vector.broadcast %83 : vector<1x32xf32> to vector<8x32xf32>
    %85 = arith.addf %82, %84 : vector<8x32xf32>
    %cst_53 = arith.constant 0.000000e+00 : f32
    %86 = vector.broadcast %cst_53 : f32 to vector<8x32xf32>
    %87 = arith.maximumf %85, %86 : vector<8x32xf32>
    %c2_54 = arith.constant 2 : index
    %c0_55 = arith.constant 0 : index
    %c0_56 = arith.constant 0 : index
    %88 = vector.load %arg4[%c2_54, %c0_55, %c0_56] : memref<4x32x8xf32, #tpu.memory_space<vmem>>, vector<1x32x8xf32>
    %89 = vector.shape_cast %88 : vector<1x32x8xf32> to vector<32x8xf32>
    %cst_57 = arith.constant dense<0.000000e+00> : vector<8x8xf32>
    %90 = tpu.matmul %87, %89, %cst_57 {dimension_numbers = #tpu.dot_dimension_numbers<[1], [0], [0], [1], [0, 0, 1, 1], [], []>} : vector<8x32xf32>, vector<32x8xf32>, vector<8x8xf32> -> vector<8x8xf32>
    %91 = vector.extract_strided_slice %71 {offsets = [2, 0], sizes = [1, 8], strides = [1, 1]} : vector<4x32xf32> to vector<1x8xf32>
    %92 = vector.broadcast %91 : vector<1x8xf32> to vector<8x8xf32>
    %93 = arith.addf %90, %92 : vector<8x8xf32>
    %c2_58 = arith.constant 2 : index
    %c0_59 = arith.constant 0 : index
    %c0_60 = arith.constant 0 : index
    %94 = vector.load %arg5[%c2_58, %c0_59, %c0_60] : memref<4x8x24xf32, #tpu.memory_space<vmem>>, vector<1x8x24xf32>
    %95 = vector.shape_cast %94 : vector<1x8x24xf32> to vector<8x24xf32>
    %cst_61 = arith.constant dense<0.000000e+00> : vector<8x24xf32>
    %96 = tpu.matmul %93, %95, %cst_61 {dimension_numbers = #tpu.dot_dimension_numbers<[1], [0], [0], [1], [0, 0, 1, 1], [], []>} : vector<8x8xf32>, vector<8x24xf32>, vector<8x24xf32> -> vector<8x24xf32>
    %97 = vector.extract_strided_slice %71 {offsets = [3, 0], sizes = [1, 24], strides = [1, 1]} : vector<4x32xf32> to vector<1x24xf32>
    %98 = vector.broadcast %97 : vector<1x24xf32> to vector<8x24xf32>
    %99 = arith.addf %96, %98 : vector<8x24xf32>
    %100 = vector.extract_strided_slice %99 {offsets = [0, 0], sizes = [8, 16], strides = [1, 1]} : vector<8x24xf32> to vector<8x16xf32>
    %101 = arith.subf %67, %100 : vector<8x16xf32>
    %102 = vector.extract_strided_slice %99 {offsets = [0, 16], sizes = [8, 8], strides = [1, 1]} : vector<8x24xf32> to vector<8x8xf32>
    %103 = arith.addf %69, %102 : vector<8x8xf32>
    %c3 = arith.constant 3 : index
    %c0_62 = arith.constant 0 : index
    %c0_63 = arith.constant 0 : index
    %104 = vector.load %arg6[%c3, %c0_62, %c0_63] : memref<4x4x32xf32, #tpu.memory_space<vmem>>, vector<1x4x32xf32>
    %105 = vector.shape_cast %104 : vector<1x4x32xf32> to vector<4x32xf32>
    %c3_64 = arith.constant 3 : index
    %c0_65 = arith.constant 0 : index
    %c0_66 = arith.constant 0 : index
    %106 = vector.load %arg2[%c3_64, %c0_65, %c0_66] : memref<4x16x32xf32, #tpu.memory_space<vmem>>, vector<1x16x32xf32>
    %107 = vector.shape_cast %106 : vector<1x16x32xf32> to vector<16x32xf32>
    %cst_67 = arith.constant dense<0.000000e+00> : vector<8x32xf32>
    %108 = tpu.matmul %101, %107, %cst_67 {dimension_numbers = #tpu.dot_dimension_numbers<[1], [0], [0], [1], [0, 0, 1, 1], [], []>} : vector<8x16xf32>, vector<16x32xf32>, vector<8x32xf32> -> vector<8x32xf32>
    %109 = vector.extract_strided_slice %105 {offsets = [0, 0], sizes = [1, 32], strides = [1, 1]} : vector<4x32xf32> to vector<1x32xf32>
    %110 = vector.broadcast %109 : vector<1x32xf32> to vector<8x32xf32>
    %111 = arith.addf %108, %110 : vector<8x32xf32>
    %cst_68 = arith.constant 0.000000e+00 : f32
    %112 = vector.broadcast %cst_68 : f32 to vector<8x32xf32>
    %113 = arith.maximumf %111, %112 : vector<8x32xf32>
    %c3_69 = arith.constant 3 : index
    %c0_70 = arith.constant 0 : index
    %c0_71 = arith.constant 0 : index
    %114 = vector.load %arg3[%c3_69, %c0_70, %c0_71] : memref<4x32x32xf32, #tpu.memory_space<vmem>>, vector<1x32x32xf32>
    %115 = vector.shape_cast %114 : vector<1x32x32xf32> to vector<32x32xf32>
    %cst_72 = arith.constant dense<0.000000e+00> : vector<8x32xf32>
    %116 = tpu.matmul %113, %115, %cst_72 {dimension_numbers = #tpu.dot_dimension_numbers<[1], [0], [0], [1], [0, 0, 1, 1], [], []>} : vector<8x32xf32>, vector<32x32xf32>, vector<8x32xf32> -> vector<8x32xf32>
    %117 = vector.extract_strided_slice %105 {offsets = [1, 0], sizes = [1, 32], strides = [1, 1]} : vector<4x32xf32> to vector<1x32xf32>
    %118 = vector.broadcast %117 : vector<1x32xf32> to vector<8x32xf32>
    %119 = arith.addf %116, %118 : vector<8x32xf32>
    %cst_73 = arith.constant 0.000000e+00 : f32
    %120 = vector.broadcast %cst_73 : f32 to vector<8x32xf32>
    %121 = arith.maximumf %119, %120 : vector<8x32xf32>
    %c3_74 = arith.constant 3 : index
    %c0_75 = arith.constant 0 : index
    %c0_76 = arith.constant 0 : index
    %122 = vector.load %arg4[%c3_74, %c0_75, %c0_76] : memref<4x32x8xf32, #tpu.memory_space<vmem>>, vector<1x32x8xf32>
    %123 = vector.shape_cast %122 : vector<1x32x8xf32> to vector<32x8xf32>
    %cst_77 = arith.constant dense<0.000000e+00> : vector<8x8xf32>
    %124 = tpu.matmul %121, %123, %cst_77 {dimension_numbers = #tpu.dot_dimension_numbers<[1], [0], [0], [1], [0, 0, 1, 1], [], []>} : vector<8x32xf32>, vector<32x8xf32>, vector<8x8xf32> -> vector<8x8xf32>
    %125 = vector.extract_strided_slice %105 {offsets = [2, 0], sizes = [1, 8], strides = [1, 1]} : vector<4x32xf32> to vector<1x8xf32>
    %126 = vector.broadcast %125 : vector<1x8xf32> to vector<8x8xf32>
    %127 = arith.addf %124, %126 : vector<8x8xf32>
    %c3_78 = arith.constant 3 : index
    %c0_79 = arith.constant 0 : index
    %c0_80 = arith.constant 0 : index
    %128 = vector.load %arg5[%c3_78, %c0_79, %c0_80] : memref<4x8x24xf32, #tpu.memory_space<vmem>>, vector<1x8x24xf32>
    %129 = vector.shape_cast %128 : vector<1x8x24xf32> to vector<8x24xf32>
    %cst_81 = arith.constant dense<0.000000e+00> : vector<8x24xf32>
    %130 = tpu.matmul %127, %129, %cst_81 {dimension_numbers = #tpu.dot_dimension_numbers<[1], [0], [0], [1], [0, 0, 1, 1], [], []>} : vector<8x8xf32>, vector<8x24xf32>, vector<8x24xf32> -> vector<8x24xf32>
    %131 = vector.extract_strided_slice %105 {offsets = [3, 0], sizes = [1, 24], strides = [1, 1]} : vector<4x32xf32> to vector<1x24xf32>
    %132 = vector.broadcast %131 : vector<1x24xf32> to vector<8x24xf32>
    %133 = arith.addf %130, %132 : vector<8x24xf32>
    %134 = vector.extract_strided_slice %133 {offsets = [0, 16], sizes = [8, 8], strides = [1, 1]} : vector<8x24xf32> to vector<8x8xf32>
    %135 = arith.addf %103, %134 : vector<8x8xf32>
    %c0_82 = arith.constant 0 : index
    %c0_83 = arith.constant 0 : index
    %136 = vector.load %arg7[%c0_82, %c0_83] : memref<8x8xf32, #tpu.memory_space<vmem>>, vector<8x8xf32>
    tpu.vector_store %arg7[%c0_82, %c0_83], %135 {strides = array<i32>} : memref<8x8xf32, #tpu.memory_space<vmem>>, vector<8x8xf32>,
    return
  }
  func.func @transform_0(%arg0: i32) -> (i32, i32) {
    %c0_i32 = arith.constant 0 : i32
    %c0_i32_0 = arith.constant 0 : i32
    return %arg0, %c0_i32 : i32, i32
  }
  func.func @transform_1(%arg0: i32) -> (i32, i32, i32) {
    %c0_i32 = arith.constant 0 : i32
    %c0_i32_0 = arith.constant 0 : i32
    %c0_i32_1 = arith.constant 0 : i32
    %c0_i32_2 = arith.constant 0 : i32
    return %c0_i32, %c0_i32_0, %c0_i32_1 : i32, i32, i32
  }
  func.func @transform_2(%arg0: i32) -> (i32, i32, i32) {
    %c0_i32 = arith.constant 0 : i32
    %c0_i32_0 = arith.constant 0 : i32
    %c0_i32_1 = arith.constant 0 : i32
    %c0_i32_2 = arith.constant 0 : i32
    return %c0_i32, %c0_i32_0, %c0_i32_1 : i32, i32, i32
  }
  func.func @transform_3(%arg0: i32) -> (i32, i32, i32) {
    %c0_i32 = arith.constant 0 : i32
    %c0_i32_0 = arith.constant 0 : i32
    %c0_i32_1 = arith.constant 0 : i32
    %c0_i32_2 = arith.constant 0 : i32
    return %c0_i32, %c0_i32_0, %c0_i32_1 : i32, i32, i32
  }
  func.func @transform_4(%arg0: i32) -> (i32, i32, i32) {
    %c0_i32 = arith.constant 0 : i32
    %c0_i32_0 = arith.constant 0 : i32
    %c0_i32_1 = arith.constant 0 : i32
    %c0_i32_2 = arith.constant 0 : i32
    return %c0_i32, %c0_i32_0, %c0_i32_1 : i32, i32, i32
  }
  func.func @transform_5(%arg0: i32) -> (i32, i32, i32) {
    %c0_i32 = arith.constant 0 : i32
    %c0_i32_0 = arith.constant 0 : i32
    %c0_i32_1 = arith.constant 0 : i32
    %c0_i32_2 = arith.constant 0 : i32
    return %c0_i32, %c0_i32_0, %c0_i32_1 : i32, i32, i32
  }
  func.func @transform_6(%arg0: i32) -> (i32, i32) {
    %c0_i32 = arith.constant 0 : i32
    %c0_i32_0 = arith.constant 0 : i32
    return %arg0, %c0_i32 : i32, i32
  }
}

</mosaic_0001>

<llo_original>
// kernel: tpu_custom_call.1
$region0: #{tpu_custom_call.1}
  #allocation0 [shape = 'u32[]', space=smem, size = 0x4, offset = 0x4, fixed_abs, tag = 'smem constant byte address 0x4 - core index']
  #allocation1 [shape = 'u32[144,128]{1,0:T(1,128)}', space=vmem, size = 0x12000, scoped, tag = 'internal scratch']
  %s0 = inlined_call_operand.hbm [shape: f32[8,16], index: 0, kind: input, shape index: {}]
  %s1 = inlined_call_operand.hbm [shape: f32[4,16,32], index: 1, kind: input, shape index: {}]
  %s2 = inlined_call_operand.vmem [shape: f32[4,32,32], index: 2, kind: input, shape index: {}]
  %s3 = inlined_call_operand.vmem [shape: f32[4,32,8], index: 3, kind: input, shape index: {}]
  %s4 = inlined_call_operand.vmem [shape: f32[4,8,24], index: 4, kind: input, shape index: {}]
  %s5 = inlined_call_operand.vmem [shape: f32[4,4,32], index: 5, kind: input, shape index: {}]
  %s6 = inlined_call_operand.hbm [shape: f32[8,8], index: 6, kind: output, shape index: {}]
  %s7 = sld [smem:[#allocation0]]
  $region42: #{tpu_custom_call.1} parent=0
    _
  %s9 = ssub.s32 1, %s7
  %s10 = scalar_select 0, %s9, %s7
  $region1: #{tpu_custom_call.1} parent=0
    #allocation2 [shape = 'u8[4096]{0}', space=vmem, size = 0x1000, scoped, tag = 'input window, operand 0, single buffered']
    #allocation3 [shape = 's32[1]{0}', space=sflag, size = 0x4, scoped, tag = 'scoped memory for tpu_custom_call.1']
    #allocation4 [shape = 's32[1]{0}', space=sflag, size = 0x4, scoped, tag = 'scoped memory for tpu_custom_call.1']
    #allocation5 [shape = 'u8[32768]{0}', space=vmem, size = 0x8000, scoped, tag = 'input window, operand 1, single buffered']
    #allocation6 [shape = 's32[1]{0}', space=sflag, size = 0x4, scoped, tag = 'scoped memory for tpu_custom_call.1']
    #allocation7 [shape = 'u8[4096]{0}', space=vmem, size = 0x1000, scoped, tag = 'output window, operand 0, single buffered']
    %11 = vsyncpa [#allocation3], 0
    %12 = vsyncpa [#allocation6], 0
    %13 = vsyncpa [#allocation4], 0
    // Predicated region
    $region2: #{tpu_custom_call.1} parent=1 // pred_check
      _
    $region3: #{tpu_custom_call.1} parent=1 // pred_check_branch
      %15 = sbr.rel (0) target = $region5
    $region4: #{tpu_custom_call.1} parent=1 // pred_region
      %s17 = ssub.s32 128, 128
      %18 = vsyncadd [#allocation3], %s17
      %s20 = sshll.u32 [#allocation2], 4
      %s21 = int_to_ptr.vmem [resolvable:$true] %s20
      %23 = dma.hbm_to_vmem [thread:$0]  %s0, 128, %s21, [#allocation3]
    $region5: #{tpu_custom_call.1} parent=1 // pred_fallthru
      _
    // Predicated region
    $region6: #{tpu_custom_call.1} parent=1 // pred_check
      _
    $region7: #{tpu_custom_call.1} parent=1 // pred_check_branch
      %25 = sbr.rel (0) target = $region9
    $region8: #{tpu_custom_call.1} parent=1 // pred_region
      %s27 = ssub.s32 1024, 1024
      %28 = vsyncadd [#allocation6], %s27
      %s29 = sshll.u32 [#allocation5], 4
      %s30 = int_to_ptr.vmem [resolvable:$true] %s29
      %35 = dma.hbm_to_vmem [thread:$0]  %s1, 1024, %s30, [#allocation6], 128, 128, 8
    $region9: #{tpu_custom_call.1} parent=1 // pred_fallthru
      _
    // Predicated region
    $region10: #{tpu_custom_call.1} parent=1 // pred_check
      _
    $region11: #{tpu_custom_call.1} parent=1 // pred_check_branch
      %37 = sbr.rel (0) target = $region13
    $region12: #{tpu_custom_call.1} parent=1 // pred_region
      _
    $region13: #{tpu_custom_call.1} parent=1 // pred_fallthru
      _
    // Predicated region
    $region14: #{tpu_custom_call.1} parent=1 // pred_check
      _
    $region15: #{tpu_custom_call.1} parent=1 // pred_check_branch
      %39 = sbr.rel (0) target = $region17
    $region16: #{tpu_custom_call.1} parent=1 // pred_region
      _
    $region17: #{tpu_custom_call.1} parent=1 // pred_fallthru
      _
    // Predicated region
    $region18: #{tpu_custom_call.1} parent=1 // pred_check
      _
    $region19: #{tpu_custom_call.1} parent=1 // pred_check_branch
      %41 = sbr.rel (0) target = $region21
    $region20: #{tpu_custom_call.1} parent=1 // pred_region
      _
    $region21: #{tpu_custom_call.1} parent=1 // pred_fallthru
      _
    // Predicated region
    $region22: #{tpu_custom_call.1} parent=1 // pred_check
      _
    $region23: #{tpu_custom_call.1} parent=1 // pred_check_branch
      %43 = sbr.rel (0) target = $region25
    $region24: #{tpu_custom_call.1} parent=1 // pred_region
      _
    $region25: #{tpu_custom_call.1} parent=1 // pred_fallthru
      _
    // Predicated region
    $region26: #{tpu_custom_call.1} parent=1 // pred_check
      _
    $region27: #{tpu_custom_call.1} parent=1 // pred_check_branch
      %45 = sbr.rel (0) target = $region29
    $region28: #{tpu_custom_call.1} parent=1 // pred_region
      %46 = dma.done [#allocation3], 128
    $region29: #{tpu_custom_call.1} parent=1 // pred_fallthru
      _
    // Predicated region
    $region30: #{tpu_custom_call.1} parent=1 // pred_check
      _
    $region31: #{tpu_custom_call.1} parent=1 // pred_check_branch
      %48 = sbr.rel (0) target = $region33
    $region32: #{tpu_custom_call.1} parent=1 // pred_region
      %49 = dma.done [#allocation6], 1024
    $region33: #{tpu_custom_call.1} parent=1 // pred_fallthru
      _
    %v50 = vld [vmem:[#allocation2] sm:$0xff]
    %v51 = vld [vmem:[%s5] sm:$0xf]
    %v52 = vld [vmem:[#allocation5] sm:$0xff]
    %v53 = vld [vmem:[#allocation5 + $0x8] sm:$0xff]
    %v54 = vlaneseq
    %v55 = vshrl.u32 %v54, 7
    %v56 = vsub.s32 0, %v55
    %v57 = vrot.slane %v51, %v56
    %vm58 = vcmask 130048
    %v60 = vsel %vm58, %v50, 0
    %62 = vmatprep.subr.mxu0 0.0
    %63 = vmatpush1.msra.mxu0 %v52
    %64 = vmatprep.subr.mxu0 0.0
    %65 = vmatpush1.msra.mxu0 %v53
    %66 = vmatprep.subr.mxu0 0.0
    %67 = vmatpush1.msra.mxu0 0.0
    %68 = vmatprep.subr.mxu0 0.0
    %69 = vmatpush1.msra.mxu0 0.0
    %70 = vmatprep.subr.mxu0 0.0
    %71 = vmatpush1.msra.mxu0 0.0
    %72 = vmatprep.subr.mxu0 0.0
    %73 = vmatpush1.msra.mxu0 0.0
    %74 = vmatprep.subr.mxu0 0.0
    %75 = vmatpush1.msra.mxu0 0.0
    %76 = vmatprep.subr.mxu0 0.0
    %77 = vmatpush1.msra.mxu0 0.0
    %78 = vmatprep.subr.mxu0 0.0
    %79 = vmatpush1.msra.mxu0 0.0
    %80 = vmatprep.subr.mxu0 0.0
    %81 = vmatpush1.msra.mxu0 0.0
    %82 = vmatprep.subr.mxu0 0.0
    %83 = vmatpush1.msra.mxu0 0.0
    %84 = vmatprep.subr.mxu0 0.0
    %85 = vmatpush1.msra.mxu0 0.0
    %86 = vmatprep.subr.mxu0 0.0
    %87 = vmatpush1.msra.mxu0 0.0
    %88 = vmatprep.subr.mxu0 0.0
    %89 = vmatpush1.msra.mxu0 0.0
    %90 = vmatprep.subr.mxu0 0.0
    %91 = vmatpush1.msra.mxu0 0.0
    %92 = vmatprep.subr.mxu0 0.0
    %93 = vmatpush1.msra.mxu0 0.0
    %94 = vmatprep.subr.mxu0 0.0
    %95 = vmatpush1.msra.mxu0 0.0
    %96 = vmatprep.subr.mxu0 0.0
    %97 = vmatpush1.msra.mxu0 0.0
    %98 = vmatprep.subr.mxu0 0.0
    %99 = vmatpush1.msra.mxu0 0.0
    %100 = vmatprep.subr.mxu0 0.0
    %101 = vmatpush1.msra.mxu0 0.0
    %102 = vmatprep.subr.mxu0 0.0
    %103 = vmatpush1.msra.mxu0 0.0
    %104 = vmatprep.subr.mxu0 0.0
    %105 = vmatpush1.msra.mxu0 0.0
    %106 = vmatprep.subr.mxu0 0.0
    %107 = vmatpush1.msra.mxu0 0.0
    %108 = vmatprep.subr.mxu0 0.0
    %109 = vmatpush1.msra.mxu0 0.0
    %110 = vmatprep.subr.mxu0 0.0
    %111 = vmatpush1.msra.mxu0 0.0
    %112 = vmatprep.subr.mxu0 0.0
    %113 = vmatpush1.msra.mxu0 0.0
    %114 = vmatprep.subr.mxu0 0.0
    %115 = vmatpush1.msra.mxu0 0.0
    %116 = vmatprep.subr.mxu0 0.0
    %117 = vmatpush1.msra.mxu0 0.0
    %118 = vmatprep.subr.mxu0 0.0
    %119 = vmatpush1.msra.mxu0 0.0
    %120 = vmatprep.subr.mxu0 0.0
    %121 = vmatpush1.msra.mxu0 0.0
    %122 = vmatprep.subr.mxu0 0.0
    %123 = vmatpush1.msra.mxu0 0.0
    %124 = vmatprep.subr.mxu0 0.0
    %125 = vmatpush1.msra.mxu0 0.0
    %126 = vmatprep.mubr.f32.mxu0 0.0
    %127 = vmatmul.mubr.f32.gmra.mrb[0].mxu0 %v60
    %v128 = vpop.f32.mrb[0].mxu0
    %v129 = vadd.f32 %v57, %v128
    %v130 = vpop.f32.mrb[0].mxu0
    %131 = vdwg.mxu0
    %v132 = vmax.f32 %v129, 0.0
    %v133 = vld [vmem:[%s2] sm:$0xff]
    %v134 = vld [vmem:[%s2 + $0x8] sm:$0xff]
    %v135 = vld [vmem:[%s2 + $0x10] sm:$0xff]
    %v136 = vld [vmem:[%s2 + $0x18] sm:$0xff]
    %v137 = vlaneseq
    %v138 = vshrl.u32 %v137, 7
    %v139 = vsub.s32 1, %v138
    %v140 = vrot.slane %v51, %v139
    %vm141 = vcmask 261120
    %v143 = vsel %vm141, %v132, 0
    %145 = vmatprep.subr.mxu0 0.0
    %146 = vmatpush1.msra.mxu0 %v133
    %147 = vmatprep.subr.mxu0 0.0
    %148 = vmatpush1.msra.mxu0 %v134
    %149 = vmatprep.subr.mxu0 0.0
    %150 = vmatpush1.msra.mxu0 %v135
    %151 = vmatprep.subr.mxu0 0.0
    %152 = vmatpush1.msra.mxu0 %v136
    %153 = vmatprep.subr.mxu0 0.0
    %154 = vmatpush1.msra.mxu0 0.0
    %155 = vmatprep.subr.mxu0 0.0
    %156 = vmatpush1.msra.mxu0 0.0
    %157 = vmatprep.subr.mxu0 0.0
    %158 = vmatpush1.msra.mxu0 0.0
    %159 = vmatprep.subr.mxu0 0.0
    %160 = vmatpush1.msra.mxu0 0.0
    %161 = vmatprep.subr.mxu0 0.0
    %162 = vmatpush1.msra.mxu0 0.0
    %163 = vmatprep.subr.mxu0 0.0
    %164 = vmatpush1.msra.mxu0 0.0
    %165 = vmatprep.subr.mxu0 0.0
    %166 = vmatpush1.msra.mxu0 0.0
    %167 = vmatprep.subr.mxu0 0.0
    %168 = vmatpush1.msra.mxu0 0.0
    %169 = vmatprep.subr.mxu0 0.0
    %170 = vmatpush1.msra.mxu0 0.0
    %171 = vmatprep.subr.mxu0 0.0
    %172 = vmatpush1.msra.mxu0 0.0
    %173 = vmatprep.subr.mxu0 0.0
    %174 = vmatpush1.msra.mxu0 0.0
    %175 = vmatprep.subr.mxu0 0.0
    %176 = vmatpush1.msra.mxu0 0.0
    %177 = vmatprep.subr.mxu0 0.0
    %178 = vmatpush1.msra.mxu0 0.0
    %179 = vmatprep.subr.mxu0 0.0
    %180 = vmatpush1.msra.mxu0 0.0
    %181 = vmatprep.subr.mxu0 0.0
    %182 = vmatpush1.msra.mxu0 0.0
    %183 = vmatprep.subr.mxu0 0.0
    %184 = vmatpush1.msra.mxu0 0.0
    %185 = vmatprep.subr.mxu0 0.0
    %186 = vmatpush1.msra.mxu0 0.0
    %187 = vmatprep.subr.mxu0 0.0
    %188 = vmatpush1.msra.mxu0 0.0
    %189 = vmatprep.subr.mxu0 0.0
    %190 = vmatpush1.msra.mxu0 0.0
    %191 = vmatprep.subr.mxu0 0.0
    %192 = vmatpush1.msra.mxu0 0.0
    %193 = vmatprep.subr.mxu0 0.0
    %194 = vmatpush1.msra.mxu0 0.0
    %195 = vmatprep.subr.mxu0 0.0
    %196 = vmatpush1.msra.mxu0 0.0
    %197 = vmatprep.subr.mxu0 0.0
    %198 = vmatpush1.msra.mxu0 0.0
    %199 = vmatprep.subr.mxu0 0.0
    %200 = vmatpush1.msra.mxu0 0.0
    %201 = vmatprep.subr.mxu0 0.0
    %202 = vmatpush1.msra.mxu0 0.0
    %203 = vmatprep.subr.mxu0 0.0
    %204 = vmatpush1.msra.mxu0 0.0
    %205 = vmatprep.subr.mxu0 0.0
    %206 = vmatpush1.msra.mxu0 0.0
    %207 = vmatprep.subr.mxu0 0.0
    %208 = vmatpush1.msra.mxu0 0.0
    %209 = vmatprep.mubr.f32.mxu0 0.0
    %210 = vmatmul.mubr.f32.gmra.mrb[0].mxu0 %v143
    %v211 = vpop.f32.mrb[0].mxu0
    %v212 = vadd.f32 %v140, %v211
    %v213 = vpop.f32.mrb[0].mxu0
    %214 = vdwg.mxu0
    %v215 = vmax.f32 %v212, 0.0
    %v216 = vld [vmem:[%s3] sm:$0xff]
    %v217 = vld [vmem:[%s3 + $0x8] sm:$0xff]
    %v218 = vld [vmem:[%s3 + $0x10] sm:$0xff]
    %v219 = vld [vmem:[%s3 + $0x18] sm:$0xff]
    %v220 = vlaneseq
    %v221 = vshrl.u32 %v220, 7
    %v222 = vsub.s32 2, %v221
    %v223 = vrot.slane %v51, %v222
    %v225 = vsel %vm141, %v215, 0
    %227 = vmatprep.subr.mxu0 0.0
    %228 = vmatpush1.msra.mxu0 %v216
    %229 = vmatprep.subr.mxu0 0.0
    %230 = vmatpush1.msra.mxu0 %v217
    %231 = vmatprep.subr.mxu0 0.0
    %232 = vmatpush1.msra.mxu0 %v218
    %233 = vmatprep.subr.mxu0 0.0
    %234 = vmatpush1.msra.mxu0 %v219
    %235 = vmatprep.subr.mxu0 0.0
    %236 = vmatpush1.msra.mxu0 0.0
    %237 = vmatprep.subr.mxu0 0.0
    %238 = vmatpush1.msra.mxu0 0.0
    %239 = vmatprep.subr.mxu0 0.0
    %240 = vmatpush1.msra.mxu0 0.0
    %241 = vmatprep.subr.mxu0 0.0
    %242 = vmatpush1.msra.mxu0 0.0
    %243 = vmatprep.subr.mxu0 0.0
    %244 = vmatpush1.msra.mxu0 0.0
    %245 = vmatprep.subr.mxu0 0.0
    %246 = vmatpush1.msra.mxu0 0.0
    %247 = vmatprep.subr.mxu0 0.0
    %248 = vmatpush1.msra.mxu0 0.0
    %249 = vmatprep.subr.mxu0 0.0
    %250 = vmatpush1.msra.mxu0 0.0
    %251 = vmatprep.subr.mxu0 0.0
    %252 = vmatpush1.msra.mxu0 0.0
    %253 = vmatprep.subr.mxu0 0.0
    %254 = vmatpush1.msra.mxu0 0.0
    %255 = vmatprep.subr.mxu0 0.0
    %256 = vmatpush1.msra.mxu0 0.0
    %257 = vmatprep.subr.mxu0 0.0
    %258 = vmatpush1.msra.mxu0 0.0
    %259 = vmatprep.subr.mxu0 0.0
    %260 = vmatpush1.msra.mxu0 0.0
    %261 = vmatprep.subr.mxu0 0.0
    %262 = vmatpush1.msra.mxu0 0.0
    %263 = vmatprep.subr.mxu0 0.0
    %264 = vmatpush1.msra.mxu0 0.0
    %265 = vmatprep.subr.mxu0 0.0
    %266 = vmatpush1.msra.mxu0 0.0
    %267 = vmatprep.subr.mxu0 0.0
    %268 = vmatpush1.msra.mxu0 0.0
    %269 = vmatprep.subr.mxu0 0.0
    %270 = vmatpush1.msra.mxu0 0.0
    %271 = vmatprep.subr.mxu0 0.0
    %272 = vmatpush1.msra.mxu0 0.0
    %273 = vmatprep.subr.mxu0 0.0
    %274 = vmatpush1.msra.mxu0 0.0
    %275 = vmatprep.subr.mxu0 0.0
    %276 = vmatpush1.msra.mxu0 0.0
    %277 = vmatprep.subr.mxu0 0.0
    %278 = vmatpush1.msra.mxu0 0.0
    %279 = vmatprep.subr.mxu0 0.0
    %280 = vmatpush1.msra.mxu0 0.0
    %281 = vmatprep.subr.mxu0 0.0
    %282 = vmatpush1.msra.mxu0 0.0
    %283 = vmatprep.subr.mxu0 0.0
    %284 = vmatpush1.msra.mxu0 0.0
    %285 = vmatprep.subr.mxu0 0.0
    %286 = vmatpush1.msra.mxu0 0.0
    %287 = vmatprep.subr.mxu0 0.0
    %288 = vmatpush1.msra.mxu0 0.0
    %289 = vmatprep.subr.mxu0 0.0
    %290 = vmatpush1.msra.mxu0 0.0
    %291 = vmatprep.mubr.f32.mxu0 0.0
    %292 = vmatmul.mubr.f32.gmra.mrb[0].mxu0 %v225
    %v293 = vpop.f32.mrb[0].mxu0
    %v294 = vadd.f32 %v223, %v293
    %v295 = vpop.f32.mrb[0].mxu0
    %296 = vdwg.mxu0
    %v297 = vld [vmem:[%s4] sm:$0xff]
    %v298 = vlaneseq
    %v299 = vshrl.u32 %v298, 7
    %v300 = vsub.s32 3, %v299
    %v301 = vrot.slane %v51, %v300
    %vm302 = vcmask 64512
    %v304 = vsel %vm302, %v294, 0
    %306 = vmatprep.subr.mxu0 0.0
    %307 = vmatpush1.msra.mxu0 %v297
    %308 = vmatprep.subr.mxu0 0.0
    %309 = vmatpush1.msra.mxu0 0.0
    %310 = vmatprep.subr.mxu0 0.0
    %311 = vmatpush1.msra.mxu0 0.0
    %312 = vmatprep.subr.mxu0 0.0
    %313 = vmatpush1.msra.mxu0 0.0
    %314 = vmatprep.subr.mxu0 0.0
    %315 = vmatpush1.msra.mxu0 0.0
    %316 = vmatprep.subr.mxu0 0.0
    %317 = vmatpush1.msra.mxu0 0.0
    %318 = vmatprep.subr.mxu0 0.0
    %319 = vmatpush1.msra.mxu0 0.0
    %320 = vmatprep.subr.mxu0 0.0
    %321 = vmatpush1.msra.mxu0 0.0
    %322 = vmatprep.subr.mxu0 0.0
    %323 = vmatpush1.msra.mxu0 0.0
    %324 = vmatprep.subr.mxu0 0.0
    %325 = vmatpush1.msra.mxu0 0.0
    %326 = vmatprep.subr.mxu0 0.0
    %327 = vmatpush1.msra.mxu0 0.0
    %328 = vmatprep.subr.mxu0 0.0
    %329 = vmatpush1.msra.mxu0 0.0
    %330 = vmatprep.subr.mxu0 0.0
    %331 = vmatpush1.msra.mxu0 0.0
    %332 = vmatprep.subr.mxu0 0.0
    %333 = vmatpush1.msra.mxu0 0.0
    %334 = vmatprep.subr.mxu0 0.0
    %335 = vmatpush1.msra.mxu0 0.0
    %336 = vmatprep.subr.mxu0 0.0
    %337 = vmatpush1.msra.mxu0 0.0
    %338 = vmatprep.subr.mxu0 0.0
    %339 = vmatpush1.msra.mxu0 0.0
    %340 = vmatprep.subr.mxu0 0.0
    %341 = vmatpush1.msra.mxu0 0.0
    %342 = vmatprep.subr.mxu0 0.0
    %343 = vmatpush1.msra.mxu0 0.0
    %344 = vmatprep.subr.mxu0 0.0
    %345 = vmatpush1.msra.mxu0 0.0
    %346 = vmatprep.subr.mxu0 0.0
    %347 = vmatpush1.msra.mxu0 0.0
    %348 = vmatprep.subr.mxu0 0.0
    %349 = vmatpush1.msra.mxu0 0.0
    %350 = vmatprep.subr.mxu0 0.0
    %351 = vmatpush1.msra.mxu0 0.0
    %352 = vmatprep.subr.mxu0 0.0
    %353 = vmatpush1.msra.mxu0 0.0
    %354 = vmatprep.subr.mxu0 0.0
    %355 = vmatpush1.msra.mxu0 0.0
    %356 = vmatprep.subr.mxu0 0.0
    %357 = vmatpush1.msra.mxu0 0.0
    %358 = vmatprep.subr.mxu0 0.0
    %359 = vmatpush1.msra.mxu0 0.0
    %360 = vmatprep.subr.mxu0 0.0
    %361 = vmatpush1.msra.mxu0 0.0
    %362 = vmatprep.subr.mxu0 0.0
    %363 = vmatpush1.msra.mxu0 0.0
    %364 = vmatprep.subr.mxu0 0.0
    %365 = vmatpush1.msra.mxu0 0.0
    %366 = vmatprep.subr.mxu0 0.0
    %367 = vmatpush1.msra.mxu0 0.0
    %368 = vmatprep.subr.mxu0 0.0
    %369 = vmatpush1.msra.mxu0 0.0
    %370 = vmatprep.mubr.f32.mxu0 0.0
    %371 = vmatmul.mubr.f32.gmra.mrb[0].mxu0 %v304
    %v372 = vpop.f32.mrb[0].mxu0
    %v373 = vadd.f32 %v301, %v372
    %v374 = vpop.f32.mrb[0].mxu0
    %375 = vdwg.mxu0
    %v376 = vsub.f32 %v50, %v373
    %v377 = vadd.f32 %v373, 0.0
    %s378 = scalar_lea.vmem %s5, 4
    %v379 = vld [vmem:[%s378] sm:$0xf]
    %s380 = scalar_lea.vmem [#allocation5], 16
    %v381 = vld [vmem:[%s380] sm:$0xff]
    %v382 = vld [vmem:[%s380 + $0x8] sm:$0xff]
    %v383 = vlaneseq
    %v384 = vshrl.u32 %v383, 7
    %v385 = vsub.s32 0, %v384
    %v386 = vrot.slane %v379, %v385
    %v388 = vsel %vm58, %v376, 0
    %390 = vmatprep.subr.mxu0 0.0
    %391 = vmatpush1.msra.mxu0 %v381
    %392 = vmatprep.subr.mxu0 0.0
    %393 = vmatpush1.msra.mxu0 %v382
    %394 = vmatprep.subr.mxu0 0.0
    %395 = vmatpush1.msra.mxu0 0.0
    %396 = vmatprep.subr.mxu0 0.0
    %397 = vmatpush1.msra.mxu0 0.0
    %398 = vmatprep.subr.mxu0 0.0
    %399 = vmatpush1.msra.mxu0 0.0
    %400 = vmatprep.subr.mxu0 0.0
    %401 = vmatpush1.msra.mxu0 0.0
    %402 = vmatprep.subr.mxu0 0.0
    %403 = vmatpush1.msra.mxu0 0.0
    %404 = vmatprep.subr.mxu0 0.0
    %405 = vmatpush1.msra.mxu0 0.0
    %406 = vmatprep.subr.mxu0 0.0
    %407 = vmatpush1.msra.mxu0 0.0
    %408 = vmatprep.subr.mxu0 0.0
    %409 = vmatpush1.msra.mxu0 0.0
    %410 = vmatprep.subr.mxu0 0.0
    %411 = vmatpush1.msra.mxu0 0.0
    %412 = vmatprep.subr.mxu0 0.0
    %413 = vmatpush1.msra.mxu0 0.0
    %414 = vmatprep.subr.mxu0 0.0
    %415 = vmatpush1.msra.mxu0 0.0
    %416 = vmatprep.subr.mxu0 0.0
    %417 = vmatpush1.msra.mxu0 0.0
    %418 = vmatprep.subr.mxu0 0.0
    %419 = vmatpush1.msra.mxu0 0.0
    %420 = vmatprep.subr.mxu0 0.0
    %421 = vmatpush1.msra.mxu0 0.0
    %422 = vmatprep.subr.mxu0 0.0
    %423 = vmatpush1.msra.mxu0 0.0
    %424 = vmatprep.subr.mxu0 0.0
    %425 = vmatpush1.msra.mxu0 0.0
    %426 = vmatprep.subr.mxu0 0.0
    %427 = vmatpush1.msra.mxu0 0.0
    %428 = vmatprep.subr.mxu0 0.0
    %429 = vmatpush1.msra.mxu0 0.0
    %430 = vmatprep.subr.mxu0 0.0
    %431 = vmatpush1.msra.mxu0 0.0
    %432 = vmatprep.subr.mxu0 0.0
    %433 = vmatpush1.msra.mxu0 0.0
    %434 = vmatprep.subr.mxu0 0.0
    %435 = vmatpush1.msra.mxu0 0.0
    %436 = vmatprep.subr.mxu0 0.0
    %437 = vmatpush1.msra.mxu0 0.0
    %438 = vmatprep.subr.mxu0 0.0
    %439 = vmatpush1.msra.mxu0 0.0
    %440 = vmatprep.subr.mxu0 0.0
    %441 = vmatpush1.msra.mxu0 0.0
    %442 = vmatprep.subr.mxu0 0.0
    %443 = vmatpush1.msra.mxu0 0.0
    %444 = vmatprep.subr.mxu0 0.0
    %445 = vmatpush1.msra.mxu0 0.0
    %446 = vmatprep.subr.mxu0 0.0
    %447 = vmatpush1.msra.mxu0 0.0
    %448 = vmatprep.subr.mxu0 0.0
    %449 = vmatpush1.msra.mxu0 0.0
    %450 = vmatprep.subr.mxu0 0.0
    %451 = vmatpush1.msra.mxu0 0.0
    %452 = vmatprep.subr.mxu0 0.0
    %453 = vmatpush1.msra.mxu0 0.0
    %454 = vmatprep.mubr.f32.mxu0 0.0
    %455 = vmatmul.mubr.f32.gmra.mrb[0].mxu0 %v388
    %v456 = vpop.f32.mrb[0].mxu0
    %v457 = vadd.f32 %v386, %v456
    %v458 = vpop.f32.mrb[0].mxu0
    %459 = vdwg.mxu0
    %v460 = vmax.f32 %v457, 0.0
    %s461 = scalar_lea.vmem %s2, 32
    %v462 = vld [vmem:[%s461] sm:$0xff]
    %v463 = vld [vmem:[%s461 + $0x8] sm:$0xff]
    %v464 = vld [vmem:[%s461 + $0x10] sm:$0xff]
    %v465 = vld [vmem:[%s461 + $0x18] sm:$0xff]
    %v466 = vlaneseq
    %v467 = vshrl.u32 %v466, 7
    %v468 = vsub.s32 1, %v467
    %v469 = vrot.slane %v379, %v468
    %v471 = vsel %vm141, %v460, 0
    %473 = vmatprep.subr.mxu0 0.0
    %474 = vmatpush1.msra.mxu0 %v462
    %475 = vmatprep.subr.mxu0 0.0
    %476 = vmatpush1.msra.mxu0 %v463
    %477 = vmatprep.subr.mxu0 0.0
    %478 = vmatpush1.msra.mxu0 %v464
    %479 = vmatprep.subr.mxu0 0.0
    %480 = vmatpush1.msra.mxu0 %v465
    %481 = vmatprep.subr.mxu0 0.0
    %482 = vmatpush1.msra.mxu0 0.0
    %483 = vmatprep.subr.mxu0 0.0
    %484 = vmatpush1.msra.mxu0 0.0
    %485 = vmatprep.subr.mxu0 0.0
    %486 = vmatpush1.msra.mxu0 0.0
    %487 = vmatprep.subr.mxu0 0.0
    %488 = vmatpush1.msra.mxu0 0.0
    %489 = vmatprep.subr.mxu0 0.0
    %490 = vmatpush1.msra.mxu0 0.0
    %491 = vmatprep.subr.mxu0 0.0
    %492 = vmatpush1.msra.mxu0 0.0
    %493 = vmatprep.subr.mxu0 0.0
    %494 = vmatpush1.msra.mxu0 0.0
    %495 = vmatprep.subr.mxu0 0.0
    %496 = vmatpush1.msra.mxu0 0.0
    %497 = vmatprep.subr.mxu0 0.0
    %498 = vmatpush1.msra.mxu0 0.0
    %499 = vmatprep.subr.mxu0 0.0
    %500 = vmatpush1.msra.mxu0 0.0
    %501 = vmatprep.subr.mxu0 0.0
    %502 = vmatpush1.msra.mxu0 0.0
    %503 = vmatprep.subr.mxu0 0.0
    %504 = vmatpush1.msra.mxu0 0.0
    %505 = vmatprep.subr.mxu0 0.0
    %506 = vmatpush1.msra.mxu0 0.0
    %507 = vmatprep.subr.mxu0 0.0
    %508 = vmatpush1.msra.mxu0 0.0
    %509 = vmatprep.subr.mxu0 0.0
    %510 = vmatpush1.msra.mxu0 0.0
    %511 = vmatprep.subr.mxu0 0.0
    %512 = vmatpush1.msra.mxu0 0.0
    %513 = vmatprep.subr.mxu0 0.0
    %514 = vmatpush1.msra.mxu0 0.0
    %515 = vmatprep.subr.mxu0 0.0
    %516 = vmatpush1.msra.mxu0 0.0
    %517 = vmatprep.subr.mxu0 0.0
    %518 = vmatpush1.msra.mxu0 0.0
    %519 = vmatprep.subr.mxu0 0.0
    %520 = vmatpush1.msra.mxu0 0.0
    %521 = vmatprep.subr.mxu0 0.0
    %522 = vmatpush1.msra.mxu0 0.0
    %523 = vmatprep.subr.mxu0 0.0
    %524 = vmatpush1.msra.mxu0 0.0
    %525 = vmatprep.subr.mxu0 0.0
    %526 = vmatpush1.msra.mxu0 0.0
    %527 = vmatprep.subr.mxu0 0.0
    %528 = vmatpush1.msra.mxu0 0.0
    %529 = vmatprep.subr.mxu0 0.0
    %530 = vmatpush1.msra.mxu0 0.0
    %531 = vmatprep.subr.mxu0 0.0
    %532 = vmatpush1.msra.mxu0 0.0
    %533 = vmatprep.subr.mxu0 0.0
    %534 = vmatpush1.msra.mxu0 0.0
    %535 = vmatprep.subr.mxu0 0.0
    %536 = vmatpush1.msra.mxu0 0.0
    %537 = vmatprep.mubr.f32.mxu0 0.0
    %538 = vmatmul.mubr.f32.gmra.mrb[0].mxu0 %v471
    %v539 = vpop.f32.mrb[0].mxu0
    %v540 = vadd.f32 %v469, %v539
    %v541 = vpop.f32.mrb[0].mxu0
    %542 = vdwg.mxu0
    %v543 = vmax.f32 %v540, 0.0
    %s544 = scalar_lea.vmem %s3, 32
    %v545 = vld [vmem:[%s544] sm:$0xff]
    %v546 = vld [vmem:[%s544 + $0x8] sm:$0xff]
    %v547 = vld [vmem:[%s544 + $0x10] sm:$0xff]
    %v548 = vld [vmem:[%s544 + $0x18] sm:$0xff]
    %v549 = vlaneseq
    %v550 = vshrl.u32 %v549, 7
    %v551 = vsub.s32 2, %v550
    %v552 = vrot.slane %v379, %v551
    %v554 = vsel %vm141, %v543, 0
    %556 = vmatprep.subr.mxu0 0.0
    %557 = vmatpush1.msra.mxu0 %v545
    %558 = vmatprep.subr.mxu0 0.0
    %559 = vmatpush1.msra.mxu0 %v546
    %560 = vmatprep.subr.mxu0 0.0
    %561 = vmatpush1.msra.mxu0 %v547
    %562 = vmatprep.subr.mxu0 0.0
    %563 = vmatpush1.msra.mxu0 %v548
    %564 = vmatprep.subr.mxu0 0.0
    %565 = vmatpush1.msra.mxu0 0.0
    %566 = vmatprep.subr.mxu0 0.0
    %567 = vmatpush1.msra.mxu0 0.0
    %568 = vmatprep.subr.mxu0 0.0
    %569 = vmatpush1.msra.mxu0 0.0
    %570 = vmatprep.subr.mxu0 0.0
    %571 = vmatpush1.msra.mxu0 0.0
    %572 = vmatprep.subr.mxu0 0.0
    %573 = vmatpush1.msra.mxu0 0.0
    %574 = vmatprep.subr.mxu0 0.0
    %575 = vmatpush1.msra.mxu0 0.0
    %576 = vmatprep.subr.mxu0 0.0
    %577 = vmatpush1.msra.mxu0 0.0
    %578 = vmatprep.subr.mxu0 0.0
    %579 = vmatpush1.msra.mxu0 0.0
    %580 = vmatprep.subr.mxu0 0.0
    %581 = vmatpush1.msra.mxu0 0.0
    %582 = vmatprep.subr.mxu0 0.0
    %583 = vmatpush1.msra.mxu0 0.0
    %584 = vmatprep.subr.mxu0 0.0
    %585 = vmatpush1.msra.mxu0 0.0
    %586 = vmatprep.subr.mxu0 0.0
    %587 = vmatpush1.msra.mxu0 0.0
    %588 = vmatprep.subr.mxu0 0.0
    %589 = vmatpush1.msra.mxu0 0.0
    %590 = vmatprep.subr.mxu0 0.0
    %591 = vmatpush1.msra.mxu0 0.0
    %592 = vmatprep.subr.mxu0 0.0
    %593 = vmatpush1.msra.mxu0 0.0
    %594 = vmatprep.subr.mxu0 0.0
    %595 = vmatpush1.msra.mxu0 0.0
    %596 = vmatprep.subr.mxu0 0.0
    %597 = vmatpush1.msra.mxu0 0.0
    %598 = vmatprep.subr.mxu0 0.0
    %599 = vmatpush1.msra.mxu0 0.0
    %600 = vmatprep.subr.mxu0 0.0
    %601 = vmatpush1.msra.mxu0 0.0
    %602 = vmatprep.subr.mxu0 0.0
    %603 = vmatpush1.msra.mxu0 0.0
    %604 = vmatprep.subr.mxu0 0.0
    %605 = vmatpush1.msra.mxu0 0.0
    %606 = vmatprep.subr.mxu0 0.0
    %607 = vmatpush1.msra.mxu0 0.0
    %608 = vmatprep.subr.mxu0 0.0
    %609 = vmatpush1.msra.mxu0 0.0
    %610 = vmatprep.subr.mxu0 0.0
    %611 = vmatpush1.msra.mxu0 0.0
    %612 = vmatprep.subr.mxu0 0.0
    %613 = vmatpush1.msra.mxu0 0.0
    %614 = vmatprep.subr.mxu0 0.0
    %615 = vmatpush1.msra.mxu0 0.0
    %616 = vmatprep.subr.mxu0 0.0
    %617 = vmatpush1.msra.mxu0 0.0
    %618 = vmatprep.subr.mxu0 0.0
    %619 = vmatpush1.msra.mxu0 0.0
    %620 = vmatprep.mubr.f32.mxu0 0.0
    %621 = vmatmul.mubr.f32.gmra.mrb[0].mxu0 %v554
    %v622 = vpop.f32.mrb[0].mxu0
    %v623 = vadd.f32 %v552, %v622
    %v624 = vpop.f32.mrb[0].mxu0
    %625 = vdwg.mxu0
    %s626 = scalar_lea.vmem %s4, 8
    %v627 = vld [vmem:[%s626] sm:$0xff]
    %v628 = vlaneseq
    %v629 = vshrl.u32 %v628, 7
    %v630 = vsub.s32 3, %v629
    %v631 = vrot.slane %v379, %v630
    %v633 = vsel %vm302, %v623, 0
    %635 = vmatprep.subr.mxu0 0.0
    %636 = vmatpush1.msra.mxu0 %v627
    %637 = vmatprep.subr.mxu0 0.0
    %638 = vmatpush1.msra.mxu0 0.0
    %639 = vmatprep.subr.mxu0 0.0
    %640 = vmatpush1.msra.mxu0 0.0
    %641 = vmatprep.subr.mxu0 0.0
    %642 = vmatpush1.msra.mxu0 0.0
    %643 = vmatprep.subr.mxu0 0.0
    %644 = vmatpush1.msra.mxu0 0.0
    %645 = vmatprep.subr.mxu0 0.0
    %646 = vmatpush1.msra.mxu0 0.0
    %647 = vmatprep.subr.mxu0 0.0
    %648 = vmatpush1.msra.mxu0 0.0
    %649 = vmatprep.subr.mxu0 0.0
    %650 = vmatpush1.msra.mxu0 0.0
    %651 = vmatprep.subr.mxu0 0.0
    %652 = vmatpush1.msra.mxu0 0.0
    %653 = vmatprep.subr.mxu0 0.0
    %654 = vmatpush1.msra.mxu0 0.0
    %655 = vmatprep.subr.mxu0 0.0
    %656 = vmatpush1.msra.mxu0 0.0
    %657 = vmatprep.subr.mxu0 0.0
    %658 = vmatpush1.msra.mxu0 0.0
    %659 = vmatprep.subr.mxu0 0.0
    %660 = vmatpush1.msra.mxu0 0.0
    %661 = vmatprep.subr.mxu0 0.0
    %662 = vmatpush1.msra.mxu0 0.0
    %663 = vmatprep.subr.mxu0 0.0
    %664 = vmatpush1.msra.mxu0 0.0
    %665 = vmatprep.subr.mxu0 0.0
    %666 = vmatpush1.msra.mxu0 0.0
    %667 = vmatprep.subr.mxu0 0.0
    %668 = vmatpush1.msra.mxu0 0.0
    %669 = vmatprep.subr.mxu0 0.0
    %670 = vmatpush1.msra.mxu0 0.0
    %671 = vmatprep.subr.mxu0 0.0
    %672 = vmatpush1.msra.mxu0 0.0
    %673 = vmatprep.subr.mxu0 0.0
    %674 = vmatpush1.msra.mxu0 0.0
    %675 = vmatprep.subr.mxu0 0.0
    %676 = vmatpush1.msra.mxu0 0.0
    %677 = vmatprep.subr.mxu0 0.0
    %678 = vmatpush1.msra.mxu0 0.0
    %679 = vmatprep.subr.mxu0 0.0
    %680 = vmatpush1.msra.mxu0 0.0
    %681 = vmatprep.subr.mxu0 0.0
    %682 = vmatpush1.msra.mxu0 0.0
    %683 = vmatprep.subr.mxu0 0.0
    %684 = vmatpush1.msra.mxu0 0.0
    %685 = vmatprep.subr.mxu0 0.0
    %686 = vmatpush1.msra.mxu0 0.0
    %687 = vmatprep.subr.mxu0 0.0
    %688 = vmatpush1.msra.mxu0 0.0
    %689 = vmatprep.subr.mxu0 0.0
    %690 = vmatpush1.msra.mxu0 0.0
    %691 = vmatprep.subr.mxu0 0.0
    %692 = vmatpush1.msra.mxu0 0.0
    %693 = vmatprep.subr.mxu0 0.0
    %694 = vmatpush1.msra.mxu0 0.0
    %695 = vmatprep.subr.mxu0 0.0
    %696 = vmatpush1.msra.mxu0 0.0
    %697 = vmatprep.subr.mxu0 0.0
    %698 = vmatpush1.msra.mxu0 0.0
    %699 = vmatprep.mubr.f32.mxu0 0.0
    %700 = vmatmul.mubr.f32.gmra.mrb[0].mxu0 %v633
    %v701 = vpop.f32.mrb[0].mxu0
    %v702 = vadd.f32 %v631, %v701
    %v703 = vpop.f32.mrb[0].mxu0
    %704 = vdwg.mxu0
    %v705 = vsub.f32 %v376, %v702
    %v706 = vadd.f32 %v377, %v702
    %s707 = scalar_lea.vmem %s5, 8
    %v708 = vld [vmem:[%s707] sm:$0xf]
    %s709 = scalar_lea.vmem [#allocation5], 32
    %v710 = vld [vmem:[%s709] sm:$0xff]
    %v711 = vld [vmem:[%s709 + $0x8] sm:$0xff]
    %v712 = vlaneseq
    %v713 = vshrl.u32 %v712, 7
    %v714 = vsub.s32 0, %v713
    %v715 = vrot.slane %v708, %v714
    %v717 = vsel %vm58, %v705, 0
    %719 = vmatprep.subr.mxu0 0.0
    %720 = vmatpush1.msra.mxu0 %v710
    %721 = vmatprep.subr.mxu0 0.0
    %722 = vmatpush1.msra.mxu0 %v711
    %723 = vmatprep.subr.mxu0 0.0
    %724 = vmatpush1.msra.mxu0 0.0
    %725 = vmatprep.subr.mxu0 0.0
    %726 = vmatpush1.msra.mxu0 0.0
    %727 = vmatprep.subr.mxu0 0.0
    %728 = vmatpush1.msra.mxu0 0.0
    %729 = vmatprep.subr.mxu0 0.0
    %730 = vmatpush1.msra.mxu0 0.0
    %731 = vmatprep.subr.mxu0 0.0
    %732 = vmatpush1.msra.mxu0 0.0
    %733 = vmatprep.subr.mxu0 0.0
    %734 = vmatpush1.msra.mxu0 0.0
    %735 = vmatprep.subr.mxu0 0.0
    %736 = vmatpush1.msra.mxu0 0.0
    %737 = vmatprep.subr.mxu0 0.0
    %738 = vmatpush1.msra.mxu0 0.0
    %739 = vmatprep.subr.mxu0 0.0
    %740 = vmatpush1.msra.mxu0 0.0
    %741 = vmatprep.subr.mxu0 0.0
    %742 = vmatpush1.msra.mxu0 0.0
    %743 = vmatprep.subr.mxu0 0.0
    %744 = vmatpush1.msra.mxu0 0.0
    %745 = vmatprep.subr.mxu0 0.0
    %746 = vmatpush1.msra.mxu0 0.0
    %747 = vmatprep.subr.mxu0 0.0
    %748 = vmatpush1.msra.mxu0 0.0
    %749 = vmatprep.subr.mxu0 0.0
    %750 = vmatpush1.msra.mxu0 0.0
    %751 = vmatprep.subr.mxu0 0.0
    %752 = vmatpush1.msra.mxu0 0.0
    %753 = vmatprep.subr.mxu0 0.0
    %754 = vmatpush1.msra.mxu0 0.0
    %755 = vmatprep.subr.mxu0 0.0
    %756 = vmatpush1.msra.mxu0 0.0
    %757 = vmatprep.subr.mxu0 0.0
    %758 = vmatpush1.msra.mxu0 0.0
    %759 = vmatprep.subr.mxu0 0.0
    %760 = vmatpush1.msra.mxu0 0.0
    %761 = vmatprep.subr.mxu0 0.0
    %762 = vmatpush1.msra.mxu0 0.0
    %763 = vmatprep.subr.mxu0 0.0
    %764 = vmatpush1.msra.mxu0 0.0
    %765 = vmatprep.subr.mxu0 0.0
    %766 = vmatpush1.msra.mxu0 0.0
    %767 = vmatprep.subr.mxu0 0.0
    %768 = vmatpush1.msra.mxu0 0.0
    %769 = vmatprep.subr.mxu0 0.0
    %770 = vmatpush1.msra.mxu0 0.0
    %771 = vmatprep.subr.mxu0 0.0
    %772 = vmatpush1.msra.mxu0 0.0
    %773 = vmatprep.subr.mxu0 0.0
    %774 = vmatpush1.msra.mxu0 0.0
    %775 = vmatprep.subr.mxu0 0.0
    %776 = vmatpush1.msra.mxu0 0.0
    %777 = vmatprep.subr.mxu0 0.0
    %778 = vmatpush1.msra.mxu0 0.0
    %779 = vmatprep.subr.mxu0 0.0
    %780 = vmatpush1.msra.mxu0 0.0
    %781 = vmatprep.subr.mxu0 0.0
    %782 = vmatpush1.msra.mxu0 0.0
    %783 = vmatprep.mubr.f32.mxu0 0.0
    %784 = vmatmul.mubr.f32.gmra.mrb[0].mxu0 %v717
    %v785 = vpop.f32.mrb[0].mxu0
    %v786 = vadd.f32 %v715, %v785
    %v787 = vpop.f32.mrb[0].mxu0
    %788 = vdwg.mxu0
    %v789 = vmax.f32 %v786, 0.0
    %s790 = scalar_lea.vmem %s2, 64
    %v791 = vld [vmem:[%s790] sm:$0xff]
    %v792 = vld [vmem:[%s790 + $0x8] sm:$0xff]
    %v793 = vld [vmem:[%s790 + $0x10] sm:$0xff]
    %v794 = vld [vmem:[%s790 + $0x18] sm:$0xff]
    %v795 = vlaneseq
    %v796 = vshrl.u32 %v795, 7
    %v797 = vsub.s32 1, %v796
    %v798 = vrot.slane %v708, %v797
    %v800 = vsel %vm141, %v789, 0
    %802 = vmatprep.subr.mxu0 0.0
    %803 = vmatpush1.msra.mxu0 %v791
    %804 = vmatprep.subr.mxu0 0.0
    %805 = vmatpush1.msra.mxu0 %v792
    %806 = vmatprep.subr.mxu0 0.0
    %807 = vmatpush1.msra.mxu0 %v793
    %808 = vmatprep.subr.mxu0 0.0
    %809 = vmatpush1.msra.mxu0 %v794
    %810 = vmatprep.subr.mxu0 0.0
    %811 = vmatpush1.msra.mxu0 0.0
    %812 = vmatprep.subr.mxu0 0.0
    %813 = vmatpush1.msra.mxu0 0.0
    %814 = vmatprep.subr.mxu0 0.0
    %815 = vmatpush1.msra.mxu0 0.0
    %816 = vmatprep.subr.mxu0 0.0
    %817 = vmatpush1.msra.mxu0 0.0
    %818 = vmatprep.subr.mxu0 0.0
    %819 = vmatpush1.msra.mxu0 0.0
    %820 = vmatprep.subr.mxu0 0.0
    %821 = vmatpush1.msra.mxu0 0.0
    %822 = vmatprep.subr.mxu0 0.0
    %823 = vmatpush1.msra.mxu0 0.0
    %824 = vmatprep.subr.mxu0 0.0
    %825 = vmatpush1.msra.mxu0 0.0
    %826 = vmatprep.subr.mxu0 0.0
    %827 = vmatpush1.msra.mxu0 0.0
    %828 = vmatprep.subr.mxu0 0.0
    %829 = vmatpush1.msra.mxu0 0.0
    %830 = vmatprep.subr.mxu0 0.0
    %831 = vmatpush1.msra.mxu0 0.0
    %832 = vmatprep.subr.mxu0 0.0
    %833 = vmatpush1.msra.mxu0 0.0
    %834 = vmatprep.subr.mxu0 0.0
    %835 = vmatpush1.msra.mxu0 0.0
    %836 = vmatprep.subr.mxu0 0.0
    %837 = vmatpush1.msra.mxu0 0.0
    %838 = vmatprep.subr.mxu0 0.0
    %839 = vmatpush1.msra.mxu0 0.0
    %840 = vmatprep.subr.mxu0 0.0
    %841 = vmatpush1.msra.mxu0 0.0
    %842 = vmatprep.subr.mxu0 0.0
    %843 = vmatpush1.msra.mxu0 0.0
    %844 = vmatprep.subr.mxu0 0.0
    %845 = vmatpush1.msra.mxu0 0.0
    %846 = vmatprep.subr.mxu0 0.0
    %847 = vmatpush1.msra.mxu0 0.0
    %848 = vmatprep.subr.mxu0 0.0
    %849 = vmatpush1.msra.mxu0 0.0
    %850 = vmatprep.subr.mxu0 0.0
    %851 = vmatpush1.msra.mxu0 0.0
    %852 = vmatprep.subr.mxu0 0.0
    %853 = vmatpush1.msra.mxu0 0.0
    %854 = vmatprep.subr.mxu0 0.0
    %855 = vmatpush1.msra.mxu0 0.0
    %856 = vmatprep.subr.mxu0 0.0
    %857 = vmatpush1.msra.mxu0 0.0
    %858 = vmatprep.subr.mxu0 0.0
    %859 = vmatpush1.msra.mxu0 0.0
    %860 = vmatprep.subr.mxu0 0.0
    %861 = vmatpush1.msra.mxu0 0.0
    %862 = vmatprep.subr.mxu0 0.0
    %863 = vmatpush1.msra.mxu0 0.0
    %864 = vmatprep.subr.mxu0 0.0
    %865 = vmatpush1.msra.mxu0 0.0
    %866 = vmatprep.mubr.f32.mxu0 0.0
    %867 = vmatmul.mubr.f32.gmra.mrb[0].mxu0 %v800
    %v868 = vpop.f32.mrb[0].mxu0
    %v869 = vadd.f32 %v798, %v868
    %v870 = vpop.f32.mrb[0].mxu0
    %871 = vdwg.mxu0
    %v872 = vmax.f32 %v869, 0.0
    %s873 = scalar_lea.vmem %s3, 64
    %v874 = vld [vmem:[%s873] sm:$0xff]
    %v875 = vld [vmem:[%s873 + $0x8] sm:$0xff]
    %v876 = vld [vmem:[%s873 + $0x10] sm:$0xff]
    %v877 = vld [vmem:[%s873 + $0x18] sm:$0xff]
    %v878 = vlaneseq
    %v879 = vshrl.u32 %v878, 7
    %v880 = vsub.s32 2, %v879
    %v881 = vrot.slane %v708, %v880
    %v883 = vsel %vm141, %v872, 0
    %885 = vmatprep.subr.mxu0 0.0
    %886 = vmatpush1.msra.mxu0 %v874
    %887 = vmatprep.subr.mxu0 0.0
    %888 = vmatpush1.msra.mxu0 %v875
    %889 = vmatprep.subr.mxu0 0.0
    %890 = vmatpush1.msra.mxu0 %v876
    %891 = vmatprep.subr.mxu0 0.0
    %892 = vmatpush1.msra.mxu0 %v877
    %893 = vmatprep.subr.mxu0 0.0
    %894 = vmatpush1.msra.mxu0 0.0
    %895 = vmatprep.subr.mxu0 0.0
    %896 = vmatpush1.msra.mxu0 0.0
    %897 = vmatprep.subr.mxu0 0.0
    %898 = vmatpush1.msra.mxu0 0.0
    %899 = vmatprep.subr.mxu0 0.0
    %900 = vmatpush1.msra.mxu0 0.0
    %901 = vmatprep.subr.mxu0 0.0
    %902 = vmatpush1.msra.mxu0 0.0
    %903 = vmatprep.subr.mxu0 0.0
    %904 = vmatpush1.msra.mxu0 0.0
    %905 = vmatprep.subr.mxu0 0.0
    %906 = vmatpush1.msra.mxu0 0.0
    %907 = vmatprep.subr.mxu0 0.0
    %908 = vmatpush1.msra.mxu0 0.0
    %909 = vmatprep.subr.mxu0 0.0
    %910 = vmatpush1.msra.mxu0 0.0
    %911 = vmatprep.subr.mxu0 0.0
    %912 = vmatpush1.msra.mxu0 0.0
    %913 = vmatprep.subr.mxu0 0.0
    %914 = vmatpush1.msra.mxu0 0.0
    %915 = vmatprep.subr.mxu0 0.0
    %916 = vmatpush1.msra.mxu0 0.0
    %917 = vmatprep.subr.mxu0 0.0
    %918 = vmatpush1.msra.mxu0 0.0
    %919 = vmatprep.subr.mxu0 0.0
    %920 = vmatpush1.msra.mxu0 0.0
    %921 = vmatprep.subr.mxu0 0.0
    %922 = vmatpush1.msra.mxu0 0.0
    %923 = vmatprep.subr.mxu0 0.0
    %924 = vmatpush1.msra.mxu0 0.0
    %925 = vmatprep.subr.mxu0 0.0
    %926 = vmatpush1.msra.mxu0 0.0
    %927 = vmatprep.subr.mxu0 0.0
    %928 = vmatpush1.msra.mxu0 0.0
    %929 = vmatprep.subr.mxu0 0.0
    %930 = vmatpush1.msra.mxu0 0.0
    %931 = vmatprep.subr.mxu0 0.0
    %932 = vmatpush1.msra.mxu0 0.0
    %933 = vmatprep.subr.mxu0 0.0
    %934 = vmatpush1.msra.mxu0 0.0
    %935 = vmatprep.subr.mxu0 0.0
    %936 = vmatpush1.msra.mxu0 0.0
    %937 = vmatprep.subr.mxu0 0.0
    %938 = vmatpush1.msra.mxu0 0.0
    %939 = vmatprep.subr.mxu0 0.0
    %940 = vmatpush1.msra.mxu0 0.0
    %941 = vmatprep.subr.mxu0 0.0
    %942 = vmatpush1.msra.mxu0 0.0
    %943 = vmatprep.subr.mxu0 0.0
    %944 = vmatpush1.msra.mxu0 0.0
    %945 = vmatprep.subr.mxu0 0.0
    %946 = vmatpush1.msra.mxu0 0.0
    %947 = vmatprep.subr.mxu0 0.0
    %948 = vmatpush1.msra.mxu0 0.0
    %949 = vmatprep.mubr.f32.mxu0 0.0
    %950 = vmatmul.mubr.f32.gmra.mrb[0].mxu0 %v883
    %v951 = vpop.f32.mrb[0].mxu0
    %v952 = vadd.f32 %v881, %v951
    %v953 = vpop.f32.mrb[0].mxu0
    %954 = vdwg.mxu0
    %s955 = scalar_lea.vmem %s4, 16
    %v956 = vld [vmem:[%s955] sm:$0xff]
    %v957 = vlaneseq
    %v958 = vshrl.u32 %v957, 7
    %v959 = vsub.s32 3, %v958
    %v960 = vrot.slane %v708, %v959
    %v962 = vsel %vm302, %v952, 0
    %964 = vmatprep.subr.mxu0 0.0
    %965 = vmatpush1.msra.mxu0 %v956
    %966 = vmatprep.subr.mxu0 0.0
    %967 = vmatpush1.msra.mxu0 0.0
    %968 = vmatprep.subr.mxu0 0.0
    %969 = vmatpush1.msra.mxu0 0.0
    %970 = vmatprep.subr.mxu0 0.0
    %971 = vmatpush1.msra.mxu0 0.0
    %972 = vmatprep.subr.mxu0 0.0
    %973 = vmatpush1.msra.mxu0 0.0
    %974 = vmatprep.subr.mxu0 0.0
    %975 = vmatpush1.msra.mxu0 0.0
    %976 = vmatprep.subr.mxu0 0.0
    %977 = vmatpush1.msra.mxu0 0.0
    %978 = vmatprep.subr.mxu0 0.0
    %979 = vmatpush1.msra.mxu0 0.0
    %980 = vmatprep.subr.mxu0 0.0
    %981 = vmatpush1.msra.mxu0 0.0
    %982 = vmatprep.subr.mxu0 0.0
    %983 = vmatpush1.msra.mxu0 0.0
    %984 = vmatprep.subr.mxu0 0.0
    %985 = vmatpush1.msra.mxu0 0.0
    %986 = vmatprep.subr.mxu0 0.0
    %987 = vmatpush1.msra.mxu0 0.0
    %988 = vmatprep.subr.mxu0 0.0
    %989 = vmatpush1.msra.mxu0 0.0
    %990 = vmatprep.subr.mxu0 0.0
    %991 = vmatpush1.msra.mxu0 0.0
    %992 = vmatprep.subr.mxu0 0.0
    %993 = vmatpush1.msra.mxu0 0.0
    %994 = vmatprep.subr.mxu0 0.0
    %995 = vmatpush1.msra.mxu0 0.0
    %996 = vmatprep.subr.mxu0 0.0
    %997 = vmatpush1.msra.mxu0 0.0
    %998 = vmatprep.subr.mxu0 0.0
    %999 = vmatpush1.msra.mxu0 0.0
    %1000 = vmatprep.subr.mxu0 0.0
    %1001 = vmatpush1.msra.mxu0 0.0
    %1002 = vmatprep.subr.mxu0 0.0
    %1003 = vmatpush1.msra.mxu0 0.0
    %1004 = vmatprep.subr.mxu0 0.0
    %1005 = vmatpush1.msra.mxu0 0.0
    %1006 = vmatprep.subr.mxu0 0.0
    %1007 = vmatpush1.msra.mxu0 0.0
    %1008 = vmatprep.subr.mxu0 0.0
    %1009 = vmatpush1.msra.mxu0 0.0
    %1010 = vmatprep.subr.mxu0 0.0
    %1011 = vmatpush1.msra.mxu0 0.0
    %1012 = vmatprep.subr.mxu0 0.0
    %1013 = vmatpush1.msra.mxu0 0.0
    %1014 = vmatprep.subr.mxu0 0.0
    %1015 = vmatpush1.msra.mxu0 0.0
    %1016 = vmatprep.subr.mxu0 0.0
    %1017 = vmatpush1.msra.mxu0 0.0
    %1018 = vmatprep.subr.mxu0 0.0
    %1019 = vmatpush1.msra.mxu0 0.0
    %1020 = vmatprep.subr.mxu0 0.0
    %1021 = vmatpush1.msra.mxu0 0.0
    %1022 = vmatprep.subr.mxu0 0.0
    %1023 = vmatpush1.msra.mxu0 0.0
    %1024 = vmatprep.subr.mxu0 0.0
    %1025 = vmatpush1.msra.mxu0 0.0
    %1026 = vmatprep.subr.mxu0 0.0
    %1027 = vmatpush1.msra.mxu0 0.0
    %1028 = vmatprep.mubr.f32.mxu0 0.0
    %1029 = vmatmul.mubr.f32.gmra.mrb[0].mxu0 %v962
    %v1030 = vpop.f32.mrb[0].mxu0
    %v1031 = vadd.f32 %v960, %v1030
    %v1032 = vpop.f32.mrb[0].mxu0
    %1033 = vdwg.mxu0
    %v1034 = vsub.f32 %v705, %v1031
    %v1035 = vadd.f32 %v706, %v1031
    %s1036 = scalar_lea.vmem %s5, 12
    %v1037 = vld [vmem:[%s1036] sm:$0xf]
    %s1038 = scalar_lea.vmem [#allocation5], 48
    %v1039 = vld [vmem:[%s1038] sm:$0xff]
    %v1040 = vld [vmem:[%s1038 + $0x8] sm:$0xff]
    %v1041 = vlaneseq
    %v1042 = vshrl.u32 %v1041, 7
    %v1043 = vsub.s32 0, %v1042
    %v1044 = vrot.slane %v1037, %v1043
    %v1046 = vsel %vm58, %v1034, 0
    %1048 = vmatprep.subr.mxu0 0.0
    %1049 = vmatpush1.msra.mxu0 %v1039
    %1050 = vmatprep.subr.mxu0 0.0
    %1051 = vmatpush1.msra.mxu0 %v1040
    %1052 = vmatprep.subr.mxu0 0.0
    %1053 = vmatpush1.msra.mxu0 0.0
    %1054 = vmatprep.subr.mxu0 0.0
    %1055 = vmatpush1.msra.mxu0 0.0
    %1056 = vmatprep.subr.mxu0 0.0
    %1057 = vmatpush1.msra.mxu0 0.0
    %1058 = vmatprep.subr.mxu0 0.0
    %1059 = vmatpush1.msra.mxu0 0.0
    %1060 = vmatprep.subr.mxu0 0.0
    %1061 = vmatpush1.msra.mxu0 0.0
    %1062 = vmatprep.subr.mxu0 0.0
    %1063 = vmatpush1.msra.mxu0 0.0
    %1064 = vmatprep.subr.mxu0 0.0
    %1065 = vmatpush1.msra.mxu0 0.0
    %1066 = vmatprep.subr.mxu0 0.0
    %1067 = vmatpush1.msra.mxu0 0.0
    %1068 = vmatprep.subr.mxu0 0.0
    %1069 = vmatpush1.msra.mxu0 0.0
    %1070 = vmatprep.subr.mxu0 0.0
    %1071 = vmatpush1.msra.mxu0 0.0
    %1072 = vmatprep.subr.mxu0 0.0
    %1073 = vmatpush1.msra.mxu0 0.0
    %1074 = vmatprep.subr.mxu0 0.0
    %1075 = vmatpush1.msra.mxu0 0.0
    %1076 = vmatprep.subr.mxu0 0.0
    %1077 = vmatpush1.msra.mxu0 0.0
    %1078 = vmatprep.subr.mxu0 0.0
    %1079 = vmatpush1.msra.mxu0 0.0
    %1080 = vmatprep.subr.mxu0 0.0
    %1081 = vmatpush1.msra.mxu0 0.0
    %1082 = vmatprep.subr.mxu0 0.0
    %1083 = vmatpush1.msra.mxu0 0.0
    %1084 = vmatprep.subr.mxu0 0.0
    %1085 = vmatpush1.msra.mxu0 0.0
    %1086 = vmatprep.subr.mxu0 0.0
    %1087 = vmatpush1.msra.mxu0 0.0
    %1088 = vmatprep.subr.mxu0 0.0
    %1089 = vmatpush1.msra.mxu0 0.0
    %1090 = vmatprep.subr.mxu0 0.0
    %1091 = vmatpush1.msra.mxu0 0.0
    %1092 = vmatprep.subr.mxu0 0.0
    %1093 = vmatpush1.msra.mxu0 0.0
    %1094 = vmatprep.subr.mxu0 0.0
    %1095 = vmatpush1.msra.mxu0 0.0
    %1096 = vmatprep.subr.mxu0 0.0
    %1097 = vmatpush1.msra.mxu0 0.0
    %1098 = vmatprep.subr.mxu0 0.0
    %1099 = vmatpush1.msra.mxu0 0.0
    %1100 = vmatprep.subr.mxu0 0.0
    %1101 = vmatpush1.msra.mxu0 0.0
    %1102 = vmatprep.subr.mxu0 0.0
    %1103 = vmatpush1.msra.mxu0 0.0
    %1104 = vmatprep.subr.mxu0 0.0
    %1105 = vmatpush1.msra.mxu0 0.0
    %1106 = vmatprep.subr.mxu0 0.0
    %1107 = vmatpush1.msra.mxu0 0.0
    %1108 = vmatprep.subr.mxu0 0.0
    %1109 = vmatpush1.msra.mxu0 0.0
    %1110 = vmatprep.subr.mxu0 0.0
    %1111 = vmatpush1.msra.mxu0 0.0
    %1112 = vmatprep.mubr.f32.mxu0 0.0
    %1113 = vmatmul.mubr.f32.gmra.mrb[0].mxu0 %v1046
    %v1114 = vpop.f32.mrb[0].mxu0
    %v1115 = vadd.f32 %v1044, %v1114
    %v1116 = vpop.f32.mrb[0].mxu0
    %1117 = vdwg.mxu0
    %v1118 = vmax.f32 %v1115, 0.0
    %s1119 = scalar_lea.vmem %s2, 96
    %v1120 = vld [vmem:[%s1119] sm:$0xff]
    %v1121 = vld [vmem:[%s1119 + $0x8] sm:$0xff]
    %v1122 = vld [vmem:[%s1119 + $0x10] sm:$0xff]
    %v1123 = vld [vmem:[%s1119 + $0x18] sm:$0xff]
    %v1124 = vlaneseq
    %v1125 = vshrl.u32 %v1124, 7
    %v1126 = vsub.s32 1, %v1125
    %v1127 = vrot.slane %v1037, %v1126
    %v1129 = vsel %vm141, %v1118, 0
    %1131 = vmatprep.subr.mxu0 0.0
    %1132 = vmatpush1.msra.mxu0 %v1120
    %1133 = vmatprep.subr.mxu0 0.0
    %1134 = vmatpush1.msra.mxu0 %v1121
    %1135 = vmatprep.subr.mxu0 0.0
    %1136 = vmatpush1.msra.mxu0 %v1122
    %1137 = vmatprep.subr.mxu0 0.0
    %1138 = vmatpush1.msra.mxu0 %v1123
    %1139 = vmatprep.subr.mxu0 0.0
    %1140 = vmatpush1.msra.mxu0 0.0
    %1141 = vmatprep.subr.mxu0 0.0
    %1142 = vmatpush1.msra.mxu0 0.0
    %1143 = vmatprep.subr.mxu0 0.0
    %1144 = vmatpush1.msra.mxu0 0.0
    %1145 = vmatprep.subr.mxu0 0.0
    %1146 = vmatpush1.msra.mxu0 0.0
    %1147 = vmatprep.subr.mxu0 0.0
    %1148 = vmatpush1.msra.mxu0 0.0
    %1149 = vmatprep.subr.mxu0 0.0
    %1150 = vmatpush1.msra.mxu0 0.0
    %1151 = vmatprep.subr.mxu0 0.0
    %1152 = vmatpush1.msra.mxu0 0.0
    %1153 = vmatprep.subr.mxu0 0.0
    %1154 = vmatpush1.msra.mxu0 0.0
    %1155 = vmatprep.subr.mxu0 0.0
    %1156 = vmatpush1.msra.mxu0 0.0
    %1157 = vmatprep.subr.mxu0 0.0
    %1158 = vmatpush1.msra.mxu0 0.0
    %1159 = vmatprep.subr.mxu0 0.0
    %1160 = vmatpush1.msra.mxu0 0.0
    %1161 = vmatprep.subr.mxu0 0.0
    %1162 = vmatpush1.msra.mxu0 0.0
    %1163 = vmatprep.subr.mxu0 0.0
    %1164 = vmatpush1.msra.mxu0 0.0
    %1165 = vmatprep.subr.mxu0 0.0
    %1166 = vmatpush1.msra.mxu0 0.0
    %1167 = vmatprep.subr.mxu0 0.0
    %1168 = vmatpush1.msra.mxu0 0.0
    %1169 = vmatprep.subr.mxu0 0.0
    %1170 = vmatpush1.msra.mxu0 0.0
    %1171 = vmatprep.subr.mxu0 0.0
    %1172 = vmatpush1.msra.mxu0 0.0
    %1173 = vmatprep.subr.mxu0 0.0
    %1174 = vmatpush1.msra.mxu0 0.0
    %1175 = vmatprep.subr.mxu0 0.0
    %1176 = vmatpush1.msra.mxu0 0.0
    %1177 = vmatprep.subr.mxu0 0.0
    %1178 = vmatpush1.msra.mxu0 0.0
    %1179 = vmatprep.subr.mxu0 0.0
    %1180 = vmatpush1.msra.mxu0 0.0
    %1181 = vmatprep.subr.mxu0 0.0
    %1182 = vmatpush1.msra.mxu0 0.0
    %1183 = vmatprep.subr.mxu0 0.0
    %1184 = vmatpush1.msra.mxu0 0.0
    %1185 = vmatprep.subr.mxu0 0.0
    %1186 = vmatpush1.msra.mxu0 0.0
    %1187 = vmatprep.subr.mxu0 0.0
    %1188 = vmatpush1.msra.mxu0 0.0
    %1189 = vmatprep.subr.mxu0 0.0
    %1190 = vmatpush1.msra.mxu0 0.0
    %1191 = vmatprep.subr.mxu0 0.0
    %1192 = vmatpush1.msra.mxu0 0.0
    %1193 = vmatprep.subr.mxu0 0.0
    %1194 = vmatpush1.msra.mxu0 0.0
    %1195 = vmatprep.mubr.f32.mxu0 0.0
    %1196 = vmatmul.mubr.f32.gmra.mrb[0].mxu0 %v1129
    %v1197 = vpop.f32.mrb[0].mxu0
    %v1198 = vadd.f32 %v1127, %v1197
    %v1199 = vpop.f32.mrb[0].mxu0
    %1200 = vdwg.mxu0
    %v1201 = vmax.f32 %v1198, 0.0
    %s1202 = scalar_lea.vmem %s3, 96
    %v1203 = vld [vmem:[%s1202] sm:$0xff]
    %v1204 = vld [vmem:[%s1202 + $0x8] sm:$0xff]
    %v1205 = vld [vmem:[%s1202 + $0x10] sm:$0xff]
    %v1206 = vld [vmem:[%s1202 + $0x18] sm:$0xff]
    %v1207 = vlaneseq
    %v1208 = vshrl.u32 %v1207, 7
    %v1209 = vsub.s32 2, %v1208
    %v1210 = vrot.slane %v1037, %v1209
    %v1212 = vsel %vm141, %v1201, 0
    %1214 = vmatprep.subr.mxu0 0.0
    %1215 = vmatpush1.msra.mxu0 %v1203
    %1216 = vmatprep.subr.mxu0 0.0
    %1217 = vmatpush1.msra.mxu0 %v1204
    %1218 = vmatprep.subr.mxu0 0.0
    %1219 = vmatpush1.msra.mxu0 %v1205
    %1220 = vmatprep.subr.mxu0 0.0
    %1221 = vmatpush1.msra.mxu0 %v1206
    %1222 = vmatprep.subr.mxu0 0.0
    %1223 = vmatpush1.msra.mxu0 0.0
    %1224 = vmatprep.subr.mxu0 0.0
    %1225 = vmatpush1.msra.mxu0 0.0
    %1226 = vmatprep.subr.mxu0 0.0
    %1227 = vmatpush1.msra.mxu0 0.0
    %1228 = vmatprep.subr.mxu0 0.0
    %1229 = vmatpush1.msra.mxu0 0.0
    %1230 = vmatprep.subr.mxu0 0.0
    %1231 = vmatpush1.msra.mxu0 0.0
    %1232 = vmatprep.subr.mxu0 0.0
    %1233 = vmatpush1.msra.mxu0 0.0
    %1234 = vmatprep.subr.mxu0 0.0
    %1235 = vmatpush1.msra.mxu0 0.0
    %1236 = vmatprep.subr.mxu0 0.0
    %1237 = vmatpush1.msra.mxu0 0.0
    %1238 = vmatprep.subr.mxu0 0.0
    %1239 = vmatpush1.msra.mxu0 0.0
    %1240 = vmatprep.subr.mxu0 0.0
    %1241 = vmatpush1.msra.mxu0 0.0
    %1242 = vmatprep.subr.mxu0 0.0
    %1243 = vmatpush1.msra.mxu0 0.0
    %1244 = vmatprep.subr.mxu0 0.0
    %1245 = vmatpush1.msra.mxu0 0.0
    %1246 = vmatprep.subr.mxu0 0.0
    %1247 = vmatpush1.msra.mxu0 0.0
    %1248 = vmatprep.subr.mxu0 0.0
    %1249 = vmatpush1.msra.mxu0 0.0
    %1250 = vmatprep.subr.mxu0 0.0
    %1251 = vmatpush1.msra.mxu0 0.0
    %1252 = vmatprep.subr.mxu0 0.0
    %1253 = vmatpush1.msra.mxu0 0.0
    %1254 = vmatprep.subr.mxu0 0.0
    %1255 = vmatpush1.msra.mxu0 0.0
    %1256 = vmatprep.subr.mxu0 0.0
    %1257 = vmatpush1.msra.mxu0 0.0
    %1258 = vmatprep.subr.mxu0 0.0
    %1259 = vmatpush1.msra.mxu0 0.0
    %1260 = vmatprep.subr.mxu0 0.0
    %1261 = vmatpush1.msra.mxu0 0.0
    %1262 = vmatprep.subr.mxu0 0.0
    %1263 = vmatpush1.msra.mxu0 0.0
    %1264 = vmatprep.subr.mxu0 0.0
    %1265 = vmatpush1.msra.mxu0 0.0
    %1266 = vmatprep.subr.mxu0 0.0
    %1267 = vmatpush1.msra.mxu0 0.0
    %1268 = vmatprep.subr.mxu0 0.0
    %1269 = vmatpush1.msra.mxu0 0.0
    %1270 = vmatprep.subr.mxu0 0.0
    %1271 = vmatpush1.msra.mxu0 0.0
    %1272 = vmatprep.subr.mxu0 0.0
    %1273 = vmatpush1.msra.mxu0 0.0
    %1274 = vmatprep.subr.mxu0 0.0
    %1275 = vmatpush1.msra.mxu0 0.0
    %1276 = vmatprep.subr.mxu0 0.0
    %1277 = vmatpush1.msra.mxu0 0.0
    %1278 = vmatprep.mubr.f32.mxu0 0.0
    %1279 = vmatmul.mubr.f32.gmra.mrb[0].mxu0 %v1212
    %v1280 = vpop.f32.mrb[0].mxu0
    %v1281 = vadd.f32 %v1210, %v1280
    %v1282 = vpop.f32.mrb[0].mxu0
    %1283 = vdwg.mxu0
    %s1284 = scalar_lea.vmem %s4, 24
    %v1285 = vld [vmem:[%s1284] sm:$0xff]
    %v1286 = vlaneseq
    %v1287 = vshrl.u32 %v1286, 7
    %v1288 = vsub.s32 3, %v1287
    %v1289 = vrot.slane %v1037, %v1288
    %v1291 = vsel %vm302, %v1281, 0
    %1293 = vmatprep.subr.mxu0 0.0
    %1294 = vmatpush1.msra.mxu0 %v1285
    %1295 = vmatprep.subr.mxu0 0.0
    %1296 = vmatpush1.msra.mxu0 0.0
    %1297 = vmatprep.subr.mxu0 0.0
    %1298 = vmatpush1.msra.mxu0 0.0
    %1299 = vmatprep.subr.mxu0 0.0
    %1300 = vmatpush1.msra.mxu0 0.0
    %1301 = vmatprep.subr.mxu0 0.0
    %1302 = vmatpush1.msra.mxu0 0.0
    %1303 = vmatprep.subr.mxu0 0.0
    %1304 = vmatpush1.msra.mxu0 0.0
    %1305 = vmatprep.subr.mxu0 0.0
    %1306 = vmatpush1.msra.mxu0 0.0
    %1307 = vmatprep.subr.mxu0 0.0
    %1308 = vmatpush1.msra.mxu0 0.0
    %1309 = vmatprep.subr.mxu0 0.0
    %1310 = vmatpush1.msra.mxu0 0.0
    %1311 = vmatprep.subr.mxu0 0.0
    %1312 = vmatpush1.msra.mxu0 0.0
    %1313 = vmatprep.subr.mxu0 0.0
    %1314 = vmatpush1.msra.mxu0 0.0
    %1315 = vmatprep.subr.mxu0 0.0
    %1316 = vmatpush1.msra.mxu0 0.0
    %1317 = vmatprep.subr.mxu0 0.0
    %1318 = vmatpush1.msra.mxu0 0.0
    %1319 = vmatprep.subr.mxu0 0.0
    %1320 = vmatpush1.msra.mxu0 0.0
    %1321 = vmatprep.subr.mxu0 0.0
    %1322 = vmatpush1.msra.mxu0 0.0
    %1323 = vmatprep.subr.mxu0 0.0
    %1324 = vmatpush1.msra.mxu0 0.0
    %1325 = vmatprep.subr.mxu0 0.0
    %1326 = vmatpush1.msra.mxu0 0.0
    %1327 = vmatprep.subr.mxu0 0.0
    %1328 = vmatpush1.msra.mxu0 0.0
    %1329 = vmatprep.subr.mxu0 0.0
    %1330 = vmatpush1.msra.mxu0 0.0
    %1331 = vmatprep.subr.mxu0 0.0
    %1332 = vmatpush1.msra.mxu0 0.0
    %1333 = vmatprep.subr.mxu0 0.0
    %1334 = vmatpush1.msra.mxu0 0.0
    %1335 = vmatprep.subr.mxu0 0.0
    %1336 = vmatpush1.msra.mxu0 0.0
    %1337 = vmatprep.subr.mxu0 0.0
    %1338 = vmatpush1.msra.mxu0 0.0
    %1339 = vmatprep.subr.mxu0 0.0
    %1340 = vmatpush1.msra.mxu0 0.0
    %1341 = vmatprep.subr.mxu0 0.0
    %1342 = vmatpush1.msra.mxu0 0.0
    %1343 = vmatprep.subr.mxu0 0.0
    %1344 = vmatpush1.msra.mxu0 0.0
    %1345 = vmatprep.subr.mxu0 0.0
    %1346 = vmatpush1.msra.mxu0 0.0
    %1347 = vmatprep.subr.mxu0 0.0
    %1348 = vmatpush1.msra.mxu0 0.0
    %1349 = vmatprep.subr.mxu0 0.0
    %1350 = vmatpush1.msra.mxu0 0.0
    %1351 = vmatprep.subr.mxu0 0.0
    %1352 = vmatpush1.msra.mxu0 0.0
    %1353 = vmatprep.subr.mxu0 0.0
    %1354 = vmatpush1.msra.mxu0 0.0
    %1355 = vmatprep.subr.mxu0 0.0
    %1356 = vmatpush1.msra.mxu0 0.0
    %1357 = vmatprep.mubr.f32.mxu0 0.0
    %1358 = vmatmul.mubr.f32.gmra.mrb[0].mxu0 %v1291
    %v1359 = vpop.f32.mrb[0].mxu0
    %v1360 = vadd.f32 %v1289, %v1359
    %v1361 = vpop.f32.mrb[0].mxu0
    %1362 = vdwg.mxu0
    %v1363 = vadd.f32 %v1035, %v1360
    %1365 = vrot.lane.b32.xlu0 %v1363, 112
    %v1366 = vpop.permute.xlu0 %1365
    %1368 = vst.msk [vmem:[#allocation7] sm:$0xff] %vm302, %v1366
    // Predicated region
    $region34: #{tpu_custom_call.1} parent=1 // pred_check
      _
    $region35: #{tpu_custom_call.1} parent=1 // pred_check_branch
      %1370 = sbr.rel (0) target = $region37
    $region36: #{tpu_custom_call.1} parent=1 // pred_region
      %s1372 = ssub.s32 128, 128
      %1373 = vsyncadd [#allocation4], %s1372
      %s1375 = sshll.u32 [#allocation7], 4
      %s1376 = int_to_ptr.vmem [resolvable:$true] %s1375
      %1378 = dma.vmem_to_hbm [thread:$0]  %s1376, 128, %s6, [#allocation4]
    $region37: #{tpu_custom_call.1} parent=1 // pred_fallthru
      _
    // Predicated region
    $region38: #{tpu_custom_call.1} parent=1 // pred_check
      _
    $region39: #{tpu_custom_call.1} parent=1 // pred_check_branch
      %1380 = sbr.rel (0) target = $region41
    $region40: #{tpu_custom_call.1} parent=1 // pred_region
      %1381 = dma.done [#allocation4], 128
    $region41: #{tpu_custom_call.1} parent=1 // pred_fallthru
      _
    %1382 = vsyncpa [#allocation3], 1
    %1383 = vsyncpa [#allocation6], 1
    %1384 = vsyncpa [#allocation4], 1

</llo_original>
